<compile_context>
chip_gen: v6e
topology: v6e:2x2x1
jax: 0.10.0
libtpu: 0.0.40
codegen_flags: <defaults>
</compile_context>

<pallas_src>
import functools
import numpy as np
import jax
import jax.numpy as jnp
from jax.experimental import pallas as pl
from jax.experimental.pallas import tpu as pltpu

# ---------------- db4 filter bank (matches pywt.Wavelet('db4')) --------------
_DB4_REC_LO = np.array([
    0.23037781330885523, 0.7148465705525415, 0.6308807679295904,
    -0.02798376941698385, -0.18703481171888114, 0.030841381835986965,
    0.032883011666982945, -0.010597401784997278], dtype=np.float64)
_F = 8
_DEC_LO = _DB4_REC_LO[::-1].copy()
_DEC_HI = np.array([(-1.0 if ((_F - 1 - i) % 2) else 1.0) * _DB4_REC_LO[i]
                    for i in range(_F)], dtype=np.float64)


def _dwt_matrix(L):
    """(L, 2*Lout) float64 matrix s.t. signal @ M == concat(cA, cD) of
    pywt.dwt(., 'db4', 'symmetric')."""
    p = _F - 1
    assert L >= p, "signal too short for single symmetric reflection"
    Lout = (L + _F - 1) // 2
    # symmetric ('half-sample') extension index map: ext position -> source idx
    src = np.empty(L + 2 * p, dtype=np.int64)
    for e in range(L + 2 * p):
        k = e - p
        if k < 0:
            k = -k - 1
        elif k >= L:
            k = 2 * L - 1 - k
        src[e] = k
    M = np.zeros((L, 2 * Lout), dtype=np.float64)
    # pywt downsampling convolution: out[o] = sum_j filter[j] * x_ext[F + 2o - j]
    for o in range(Lout):
        for j in range(_F):
            s = src[_F + 2 * o - j]
            M[s, o] += _DEC_LO[j]
            M[s, Lout + o] += _DEC_HI[j]
    return M, Lout


# ------------------------------- Pallas kernel -------------------------------
def _wavelet_kernel(x_ref, mbig_ref, sel_ref, sent_ref, wl_ref, bl_ref,
                    wf_ref, bf_ref, o_ref, *, levels, mean_off, level_slot):
    x = x_ref[...]                                            # (TB, input_dim)

    # Pass 1 (MXU, one 256x256 tile): packed, per-level MEAN-CENTERED
    # coefficients plus a contiguous 5-lane slab of per-level means.
    c = jnp.dot(x, mbig_ref[...], preferred_element_type=jnp.float32)  # (TB,256)

    # Per-level variance via the MXU: square once (VPU), then a tiny selector
    # matmul whose columns are 1/(n_i - 1) on level-i lanes (ddof=1 baked in).
    var = jnp.dot(c * c, sel_ref[...], preferred_element_type=jnp.float32)
    stds = jnp.sqrt(jnp.maximum(var[:, :levels], 0.0))        # (TB, levels)

    means = c[:, mean_off:mean_off + levels]                  # (TB, levels), MXU

    # Per-level max/min with host-baked additive -inf sentinels; coefficients
    # are centered, so add the mean back with one vector add per stat.
    half = c.shape[1] // 2
    slots = (c[:, :half], c[:, half:])                        # lane-aligned views
    maxs, mins = [], []
    for i in range(levels):
        s = slots[level_slot[i]]
        sent = sent_ref[i:i + 1, :]                           # (1,128): 0 / -inf
        maxs.append(jnp.max(s + sent, axis=-1, keepdims=True))
        mins.append(jnp.min(s - sent, axis=-1, keepdims=True))
    maxs = jnp.concatenate(maxs, axis=-1) + means             # (TB, levels)
    mins = jnp.concatenate(mins, axis=-1) + means             # (TB, levels)

    # stats layout [mean_0..4 | std_0..4 | max_0..4 | min_0..4] matches the
    # host-built block-diagonal WaveletLevelNet weight.
    stats = jnp.concatenate([means, stds, maxs, mins], axis=-1)  # (TB, 4*levels)

    # All 5 WaveletLevelNet Linear(4, feat) layers as one block-diagonal matmul.
    h = jnp.dot(stats, wl_ref[...], preferred_element_type=jnp.float32) + bl_ref[...]
    h = jnp.maximum(h, 0.0)                                   # (TB, levels*feat)

    # Fusion Linear (lane-padded to 128 outputs) + ReLU; Dropout(0.1) = identity.
    out = jnp.dot(h, wf_ref[...], preferred_element_type=jnp.float32) + bf_ref[...]
    o_ref[...] = jnp.maximum(out, 0.0)                        # full-lane store


def _pick_tile_b(B):
    """Largest divisor of B that is a multiple of 8 and <= 512, capped at B//2
    when B >= 16 so the 'parallel' batch axis spans >= 2 grid steps (v7x has
    two TensorCores).  Non-multiple-of-8 batches fall back to one full block."""
    if B % 8 != 0:
        return B
    cap = max(8, min(512, B // 2 if B >= 16 else B))
    t = 8
    for cand in range(8, cap + 1, 8):
        if B % cand == 0:
            t = cand
    return t


def wavelet_feature_extractor(x, params, *, levels, mean_off, level_slot,
                              out_dim, tile_b=None):
    mbig, sel, sent, wl_bd, bl_flat, wf_pad, bf_pad = params
    B, D = x.shape
    out_pad = wf_pad.shape[1]
    if tile_b is None:
        tile_b = _pick_tile_b(B)
    assert B % tile_b == 0, "batch must be divisible by tile_b"
    grid = (B // tile_b,)

    kern = functools.partial(_wavelet_kernel, levels=levels, mean_off=mean_off,
                             level_slot=tuple(level_slot))

    def call(single_buffer_weights):
        def wspec(a):
            # Constant-index weight blocks: single-buffer to halve resident
            # weight VMEM (matters most under v7x's 64 MiB VMEM).
            if single_buffer_weights:
                return pl.BlockSpec(a.shape, lambda i: (0, 0),
                                    pipeline_mode=pl.Buffered(1))
            return pl.BlockSpec(a.shape, lambda i: (0, 0))

        return pl.pallas_call(
            kern,
            out_shape=jax.ShapeDtypeStruct((B, out_pad), jnp.float32),
            grid=grid,
            in_specs=[
                # x batch tile.  (On v5e, pipeline_mode=pl.Buffered(3) here can
                # hide exposed per-step DMA if xprof shows it.)
                pl.BlockSpec((tile_b, D), lambda i: (i, 0)),
            ] + [wspec(a) for a in params],
            out_specs=pl.BlockSpec((tile_b, out_pad), lambda i: (i, 0)),
            compiler_params=pltpu.CompilerParams(
                dimension_semantics=("parallel",)),
        )(x, *params)

    try:
        out = call(True)
    except Exception:
        # Fallback for JAX versions without BlockSpec.pipeline_mode / Buffered(1).
        out = call(False)

    # NOTE: downstream consumers can take the lane-dense (B, out_pad) buffer
    # directly to avoid this extra HBM copy; we slice to keep module semantics.
    return out[:, :out_dim]


# ------------------------------ plain-JAX reference --------------------------
def _reference(x, chain_mats, chain_lens, wl, bl, wf, bf, levels):
    """Structured like the PyTorch module: per-level DWT chain, per-level
    stats -> Linear -> ReLU, concat, fusion Linear -> ReLU."""
    hi = jax.lax.Precision.HIGHEST
    a = x
    cds = []
    for M, L in zip(chain_mats, chain_lens):
        c = jnp.dot(a, M, precision=hi)
        a, d = c[:, :L], c[:, L:]
        cds.append(d)
    # wavedec order: [cA5, cD5, cD4, cD3, cD2]  (cD1 unused by the module)
    coeffs = [a] + [cds[levels - 1 - k] for k in range(levels - 1)]
    feats = []
    for i, cc in enumerate(coeffs):
        n = cc.shape[-1]
        mean = jnp.mean(cc, -1, keepdims=True)
        std = jnp.sqrt(jnp.sum((cc - mean) ** 2, -1, keepdims=True) / (n - 1))
        mx = jnp.max(cc, -1, keepdims=True)
        mn = jnp.min(cc, -1, keepdims=True)
        h = (mean * wl[4 * i:4 * i + 1] + std * wl[4 * i + 1:4 * i + 2]
             + mx * wl[4 * i + 2:4 * i + 3] + mn * wl[4 * i + 3:4 * i + 4]
             + bl[i:i + 1])
        feats.append(jnp.maximum(h, 0.0))
    combined = jnp.concatenate(feats, axis=-1)
    return jnp.maximum(jnp.dot(combined, wf, precision=hi) + bf, 0.0)


# ------------------------------------ main ------------------------------------
if __name__ == "__main__":
    B, INPUT_DIM, OUT_DIM, LEVELS, FEAT_DIM = 8, 256, 64, 5, 32

    key = jax.random.PRNGKey(0)
    kx, kw = jax.random.split(key)
    x = jax.random.normal(kx, (B, INPUT_DIM), dtype=jnp.float32)

    # ---- host glue: per-level db4 DWT matrices & their composition (f64) ----
    chain_mats, chain_lens = [], []          # per-level matrices (for reference)
    comp_details = []                        # composed cD_k, k >= 2 (cD1 is dead)
    a_prefix = np.eye(INPUT_DIM, dtype=np.float64)
    L = INPUT_DIM
    for lvl in range(LEVELS):
        M, Lout = _dwt_matrix(L)
        chain_mats.append(jnp.asarray(M.astype(np.float32)))
        chain_lens.append(Lout)
        A, Dm = M[:, :Lout], M[:, Lout:]
        if lvl >= 1:                         # skip dead cD1 composition
            comp_details.append(a_prefix @ Dm)
        a_prefix = a_prefix @ A
        L = Lout
    # coefficients consumed by the module: [cA5, cD5, cD4, cD3, cD2]
    comp_list = [a_prefix, comp_details[3], comp_details[2],
                 comp_details[1], comp_details[0]]
    lens = [int(m.shape[1]) for m in comp_list]              # [14,14,22,38,69]

    # ---- compact packed layout: 2 x 128-lane slots ---------------------------
    SLOT = 128
    N_PACK = 2 * SLOT
    offs, level_slot, o = [], [], 0
    for i in range(LEVELS - 1):
        offs.append(o); level_slot.append(0); o += lens[i]
    assert o <= SLOT, "slot-0 packing overflow"
    offs.append(SLOT); level_slot.append(1)                  # cD2 starts slot 1
    assert lens[-1] + LEVELS <= SLOT, "slot-1 packing overflow"
    mean_off = SLOT + lens[-1]                               # mean lanes 197..201

    mbig = np.zeros((INPUT_DIM, N_PACK), dtype=np.float64)   # centered coeffs+means
    sel = np.zeros((N_PACK, 8), dtype=np.float64)            # variance selector
    sent = np.full((8, SLOT), -np.inf, dtype=np.float32)     # additive sentinels
    for i, Mi in enumerate(comp_list):
        n = lens[i]
        mcol = Mi.sum(axis=1) / n                            # mean column
        mbig[:, offs[i]:offs[i] + n] = Mi - mcol[:, None]    # mean-centered coeffs
        mbig[:, mean_off + i] = mcol                         # mean from the MXU
        sel[offs[i]:offs[i] + n, i] = 1.0 / (n - 1)          # ddof=1 baked in
        lo = offs[i] % SLOT
        sent[i, lo:lo + n] = 0.0                             # level lanes "open"
    mbig = jnp.asarray(mbig.astype(np.float32))
    sel = jnp.asarray(sel.astype(np.float32))
    sent = jnp.asarray(sent)

    # ---- synthetic parameters (WaveletLevelNet + fusion) --------------------
    kws = jax.random.split(kw, 4)
    wl = jax.random.normal(kws[0], (LEVELS * 4, FEAT_DIM), jnp.float32) * 0.10
    bl = jax.random.normal(kws[1], (LEVELS, FEAT_DIM), jnp.float32) * 0.10
    wf = jax.random.normal(kws[2], (LEVELS * FEAT_DIM, OUT_DIM), jnp.float32) * 0.05
    bf = jax.random.normal(kws[3], (1, OUT_DIM), jnp.float32) * 0.05

    # fold the 5 Linear(4, feat) level nets into one block-diagonal matmul
    wl_np, bl_np = np.asarray(wl), np.asarray(bl)
    wl_bd = np.zeros((4 * LEVELS, LEVELS * FEAT_DIM), dtype=np.float32)
    for i in range(LEVELS):
        for s in range(4):                   # stat order per level: mean,std,max,min
            wl_bd[s * LEVELS + i, i * FEAT_DIM:(i + 1) * FEAT_DIM] = wl_np[4 * i + s]
    wl_bd = jnp.asarray(wl_bd)
    bl_flat = jnp.asarray(bl_np.reshape(1, LEVELS * FEAT_DIM))

    # fusion weights padded to a lane-dense (multiple-of-128) output width
    out_pad = int(-(-OUT_DIM // 128) * 128)
    wf_pad = np.zeros((LEVELS * FEAT_DIM, out_pad), dtype=np.float32)
    wf_pad[:, :OUT_DIM] = np.asarray(wf)
    bf_pad = np.zeros((1, out_pad), dtype=np.float32)
    bf_pad[:, :OUT_DIM] = np.asarray(bf)
    wf_pad, bf_pad = jnp.asarray(wf_pad), jnp.asarray(bf_pad)

    params = (mbig, sel, sent, wl_bd, bl_flat, wf_pad, bf_pad)
    out = wavelet_feature_extractor(x, params, levels=LEVELS, mean_off=mean_off,
                                    level_slot=level_slot, out_dim=OUT_DIM)
    out = jax.block_until_ready(out)

    ref = _reference(x, chain_mats, chain_lens, wl, bl, wf, bf, LEVELS)
    assert out.shape == (B, OUT_DIM)
    assert bool(jnp.all(jnp.isfinite(out)))
    assert bool(jnp.allclose(out, ref, atol=2e-4, rtol=2e-4)), \
        "mismatch vs plain-JAX reference"
    print("KERNEL_OK")
</pallas_src>

<mosaic_0001>
module attributes {stable_mosaic.version = 11 : i64} {
  func.func @_wavelet_kernel(%arg0: i32, %arg1: memref<8x256xf32, #tpu.memory_space<vmem>>, %arg2: memref<256x256xf32, #tpu.memory_space<vmem>>, %arg3: memref<256x8xf32, #tpu.memory_space<vmem>>, %arg4: memref<8x128xf32, #tpu.memory_space<vmem>>, %arg5: memref<20x160xf32, #tpu.memory_space<vmem>>, %arg6: memref<1x160xf32, #tpu.memory_space<vmem>>, %arg7: memref<160x128xf32, #tpu.memory_space<vmem>>, %arg8: memref<1x128xf32, #tpu.memory_space<vmem>>, %arg9: memref<8x128xf32, #tpu.memory_space<vmem>>) attributes {dimension_semantics = [#tpu.dimension_semantics<parallel>], iteration_bounds = array<i64: 1>, scalar_prefetch = 0 : i64, scratch_operands = 0 : i64, tpu.core_type = #tpu.core_type<tc>, window_params = [{transform_indices = @transform_0, window_bounds = array<i64: 8, 256>}, {pipeline_mode = #tpu.pipeline_mode<synchronous>, transform_indices = @transform_1, window_bounds = array<i64: 256, 256>}, {pipeline_mode = #tpu.pipeline_mode<synchronous>, transform_indices = @transform_2, window_bounds = array<i64: 256, 8>}, {pipeline_mode = #tpu.pipeline_mode<synchronous>, transform_indices = @transform_3, window_bounds = array<i64: 8, 128>}, {pipeline_mode = #tpu.pipeline_mode<synchronous>, transform_indices = @transform_4, window_bounds = array<i64: 20, 160>}, {pipeline_mode = #tpu.pipeline_mode<synchronous>, transform_indices = @transform_5, window_bounds = array<i64: 1, 160>}, {pipeline_mode = #tpu.pipeline_mode<synchronous>, transform_indices = @transform_6, window_bounds = array<i64: 160, 128>}, {pipeline_mode = #tpu.pipeline_mode<synchronous>, transform_indices = @transform_7, window_bounds = array<i64: 1, 128>}, {transform_indices = @transform_8, window_bounds = array<i64: 8, 128>}]} {
    %c0 = arith.constant 0 : index
    %c0_0 = arith.constant 0 : index
    %0 = vector.load %arg1[%c0, %c0_0] : memref<8x256xf32, #tpu.memory_space<vmem>>, vector<8x256xf32>
    %c0_1 = arith.constant 0 : index
    %c0_2 = arith.constant 0 : index
    %1 = vector.load %arg2[%c0_1, %c0_2] : memref<256x256xf32, #tpu.memory_space<vmem>>, vector<256x256xf32>
    %cst = arith.constant dense<0.000000e+00> : vector<8x256xf32>
    %2 = tpu.matmul %0, %1, %cst {dimension_numbers = #tpu.dot_dimension_numbers<[1], [0], [0], [1], [0, 0, 1, 1], [], []>} : vector<8x256xf32>, vector<256x256xf32>, vector<8x256xf32> -> vector<8x256xf32>
    %3 = arith.mulf %2, %2 : vector<8x256xf32>
    %c0_3 = arith.constant 0 : index
    %c0_4 = arith.constant 0 : index
    %4 = vector.load %arg3[%c0_3, %c0_4] : memref<256x8xf32, #tpu.memory_space<vmem>>, vector<256x8xf32>
    %cst_5 = arith.constant dense<0.000000e+00> : vector<8x8xf32>
    %5 = tpu.matmul %3, %4, %cst_5 {dimension_numbers = #tpu.dot_dimension_numbers<[1], [0], [0], [1], [0, 0, 1, 1], [], []>} : vector<8x256xf32>, vector<256x8xf32>, vector<8x8xf32> -> vector<8x8xf32>
    %6 = vector.extract_strided_slice %5 {offsets = [0, 0], sizes = [8, 5], strides = [1, 1]} : vector<8x8xf32> to vector<8x5xf32>
    %cst_6 = arith.constant 0.000000e+00 : f32
    %7 = vector.broadcast %cst_6 : f32 to vector<8x5xf32>
    %8 = arith.maximumf %6, %7 : vector<8x5xf32>
    %9 = math.sqrt %8 : vector<8x5xf32>
    %10 = vector.extract_strided_slice %2 {offsets = [0, 197], sizes = [8, 5], strides = [1, 1]} : vector<8x256xf32> to vector<8x5xf32>
    %11 = vector.extract_strided_slice %2 {offsets = [0, 0], sizes = [8, 128], strides = [1, 1]} : vector<8x256xf32> to vector<8x128xf32>
    %12 = vector.extract_strided_slice %2 {offsets = [0, 128], sizes = [8, 128], strides = [1, 1]} : vector<8x256xf32> to vector<8x128xf32>
    %c0_7 = arith.constant 0 : index
    %c0_8 = arith.constant 0 : index
    %13 = vector.load %arg4[%c0_7, %c0_8] : memref<8x128xf32, #tpu.memory_space<vmem>>, vector<1x128xf32>
    %14 = vector.broadcast %13 : vector<1x128xf32> to vector<8x128xf32>
    %15 = arith.addf %11, %14 : vector<8x128xf32>
    %cst_9 = arith.constant dense<0xFF800000> : vector<8xf32>
    %16 = vector.multi_reduction <maximumf>, %15, %cst_9 [1] : vector<8x128xf32> to vector<8xf32>
    %17 = vector.shape_cast %16 : vector<8xf32> to vector<8x1xf32>
    %18 = vector.broadcast %13 : vector<1x128xf32> to vector<8x128xf32>
    %19 = arith.subf %11, %18 : vector<8x128xf32>
    %cst_10 = arith.constant dense<0x7F800000> : vector<8xf32>
    %20 = vector.multi_reduction <minimumf>, %19, %cst_10 [1] : vector<8x128xf32> to vector<8xf32>
    %21 = vector.shape_cast %20 : vector<8xf32> to vector<8x1xf32>
    %c1 = arith.constant 1 : index
    %c0_11 = arith.constant 0 : index
    %22 = vector.load %arg4[%c1, %c0_11] : memref<8x128xf32, #tpu.memory_space<vmem>>, vector<1x128xf32>
    %23 = vector.broadcast %22 : vector<1x128xf32> to vector<8x128xf32>
    %24 = arith.addf %11, %23 : vector<8x128xf32>
    %cst_12 = arith.constant dense<0xFF800000> : vector<8xf32>
    %25 = vector.multi_reduction <maximumf>, %24, %cst_12 [1] : vector<8x128xf32> to vector<8xf32>
    %26 = vector.shape_cast %25 : vector<8xf32> to vector<8x1xf32>
    %27 = vector.broadcast %22 : vector<1x128xf32> to vector<8x128xf32>
    %28 = arith.subf %11, %27 : vector<8x128xf32>
    %cst_13 = arith.constant dense<0x7F800000> : vector<8xf32>
    %29 = vector.multi_reduction <minimumf>, %28, %cst_13 [1] : vector<8x128xf32> to vector<8xf32>
    %30 = vector.shape_cast %29 : vector<8xf32> to vector<8x1xf32>
    %c2 = arith.constant 2 : index
    %c0_14 = arith.constant 0 : index
    %31 = vector.load %arg4[%c2, %c0_14] : memref<8x128xf32, #tpu.memory_space<vmem>>, vector<1x128xf32>
    %32 = vector.broadcast %31 : vector<1x128xf32> to vector<8x128xf32>
    %33 = arith.addf %11, %32 : vector<8x128xf32>
    %cst_15 = arith.constant dense<0xFF800000> : vector<8xf32>
    %34 = vector.multi_reduction <maximumf>, %33, %cst_15 [1] : vector<8x128xf32> to vector<8xf32>
    %35 = vector.shape_cast %34 : vector<8xf32> to vector<8x1xf32>
    %36 = vector.broadcast %31 : vector<1x128xf32> to vector<8x128xf32>
    %37 = arith.subf %11, %36 : vector<8x128xf32>
    %cst_16 = arith.constant dense<0x7F800000> : vector<8xf32>
    %38 = vector.multi_reduction <minimumf>, %37, %cst_16 [1] : vector<8x128xf32> to vector<8xf32>
    %39 = vector.shape_cast %38 : vector<8xf32> to vector<8x1xf32>
    %c3 = arith.constant 3 : index
    %c0_17 = arith.constant 0 : index
    %40 = vector.load %arg4[%c3, %c0_17] : memref<8x128xf32, #tpu.memory_space<vmem>>, vector<1x128xf32>
    %41 = vector.broadcast %40 : vector<1x128xf32> to vector<8x128xf32>
    %42 = arith.addf %11, %41 : vector<8x128xf32>
    %cst_18 = arith.constant dense<0xFF800000> : vector<8xf32>
    %43 = vector.multi_reduction <maximumf>, %42, %cst_18 [1] : vector<8x128xf32> to vector<8xf32>
    %44 = vector.shape_cast %43 : vector<8xf32> to vector<8x1xf32>
    %45 = vector.broadcast %40 : vector<1x128xf32> to vector<8x128xf32>
    %46 = arith.subf %11, %45 : vector<8x128xf32>
    %cst_19 = arith.constant dense<0x7F800000> : vector<8xf32>
    %47 = vector.multi_reduction <minimumf>, %46, %cst_19 [1] : vector<8x128xf32> to vector<8xf32>
    %48 = vector.shape_cast %47 : vector<8xf32> to vector<8x1xf32>
    %c4 = arith.constant 4 : index
    %c0_20 = arith.constant 0 : index
    %49 = vector.load %arg4[%c4, %c0_20] : memref<8x128xf32, #tpu.memory_space<vmem>>, vector<1x128xf32>
    %50 = vector.broadcast %49 : vector<1x128xf32> to vector<8x128xf32>
    %51 = arith.addf %12, %50 : vector<8x128xf32>
    %cst_21 = arith.constant dense<0xFF800000> : vector<8xf32>
    %52 = vector.multi_reduction <maximumf>, %51, %cst_21 [1] : vector<8x128xf32> to vector<8xf32>
    %53 = vector.shape_cast %52 : vector<8xf32> to vector<8x1xf32>
    %54 = vector.broadcast %49 : vector<1x128xf32> to vector<8x128xf32>
    %55 = arith.subf %12, %54 : vector<8x128xf32>
    %cst_22 = arith.constant dense<0x7F800000> : vector<8xf32>
    %56 = vector.multi_reduction <minimumf>, %55, %cst_22 [1] : vector<8x128xf32> to vector<8xf32>
    %57 = vector.shape_cast %56 : vector<8xf32> to vector<8x1xf32>
    %58 = tpu.concatenate %17, %26, %35, %44, %53 in 1 : vector<8x1xf32>, vector<8x1xf32>, vector<8x1xf32>, vector<8x1xf32>, vector<8x1xf32> -> vector<8x5xf32>
    %59 = arith.addf %58, %10 : vector<8x5xf32>
    %60 = tpu.concatenate %21, %30, %39, %48, %57 in 1 : vector<8x1xf32>, vector<8x1xf32>, vector<8x1xf32>, vector<8x1xf32>, vector<8x1xf32> -> vector<8x5xf32>
    %61 = arith.addf %60, %10 : vector<8x5xf32>
    %62 = tpu.concatenate %10, %9, %59, %61 in 1 : vector<8x5xf32>, vector<8x5xf32>, vector<8x5xf32>, vector<8x5xf32> -> vector<8x20xf32>
    %c0_23 = arith.constant 0 : index
    %c0_24 = arith.constant 0 : index
    %63 = vector.load %arg5[%c0_23, %c0_24] : memref<20x160xf32, #tpu.memory_space<vmem>>, vector<20x160xf32>
    %cst_25 = arith.constant dense<0.000000e+00> : vector<8x160xf32>
    %64 = tpu.matmul %62, %63, %cst_25 {dimension_numbers = #tpu.dot_dimension_numbers<[1], [0], [0], [1], [0, 0, 1, 1], [], []>} : vector<8x20xf32>, vector<20x160xf32>, vector<8x160xf32> -> vector<8x160xf32>
    %c0_26 = arith.constant 0 : index
    %c0_27 = arith.constant 0 : index
    %65 = vector.load %arg6[%c0_26, %c0_27] : memref<1x160xf32, #tpu.memory_space<vmem>>, vector<1x160xf32>
    %66 = vector.broadcast %65 : vector<1x160xf32> to vector<8x160xf32>
    %67 = arith.addf %64, %66 : vector<8x160xf32>
    %cst_28 = arith.constant 0.000000e+00 : f32
    %68 = vector.broadcast %cst_28 : f32 to vector<8x160xf32>
    %69 = arith.maximumf %67, %68 : vector<8x160xf32>
    %c0_29 = arith.constant 0 : index
    %c0_30 = arith.constant 0 : index
    %70 = vector.load %arg7[%c0_29, %c0_30] : memref<160x128xf32, #tpu.memory_space<vmem>>, vector<160x128xf32>
    %cst_31 = arith.constant dense<0.000000e+00> : vector<8x128xf32>
    %71 = tpu.matmul %69, %70, %cst_31 {dimension_numbers = #tpu.dot_dimension_numbers<[1], [0], [0], [1], [0, 0, 1, 1], [], []>} : vector<8x160xf32>, vector<160x128xf32>, vector<8x128xf32> -> vector<8x128xf32>
    %c0_32 = arith.constant 0 : index
    %c0_33 = arith.constant 0 : index
    %72 = vector.load %arg8[%c0_32, %c0_33] : memref<1x128xf32, #tpu.memory_space<vmem>>, vector<1x128xf32>
    %73 = vector.broadcast %72 : vector<1x128xf32> to vector<8x128xf32>
    %74 = arith.addf %71, %73 : vector<8x128xf32>
    %cst_34 = arith.constant 0.000000e+00 : f32
    %75 = vector.broadcast %cst_34 : f32 to vector<8x128xf32>
    %76 = arith.maximumf %74, %75 : vector<8x128xf32>
    %c0_35 = arith.constant 0 : index
    %c0_36 = arith.constant 0 : index
    %77 = vector.load %arg9[%c0_35, %c0_36] : memref<8x128xf32, #tpu.memory_space<vmem>>, vector<8x128xf32>
    tpu.vector_store %arg9[%c0_35, %c0_36], %76 {strides = array<i32>} : memref<8x128xf32, #tpu.memory_space<vmem>>, vector<8x128xf32>,
    return
  }
  func.func @transform_0(%arg0: i32) -> (i32, i32) {
    %c0_i32 = arith.constant 0 : i32
    %c0_i32_0 = arith.constant 0 : i32
    return %arg0, %c0_i32 : i32, i32
  }
  func.func @transform_1(%arg0: i32) -> (i32, i32) {
    %c0_i32 = arith.constant 0 : i32
    %c0_i32_0 = arith.constant 0 : i32
    %c0_i32_1 = arith.constant 0 : i32
    return %c0_i32, %c0_i32_0 : i32, i32
  }
  func.func @transform_2(%arg0: i32) -> (i32, i32) {
    %c0_i32 = arith.constant 0 : i32
    %c0_i32_0 = arith.constant 0 : i32
    %c0_i32_1 = arith.constant 0 : i32
    return %c0_i32, %c0_i32_0 : i32, i32
  }
  func.func @transform_3(%arg0: i32) -> (i32, i32) {
    %c0_i32 = arith.constant 0 : i32
    %c0_i32_0 = arith.constant 0 : i32
    %c0_i32_1 = arith.constant 0 : i32
    return %c0_i32, %c0_i32_0 : i32, i32
  }
  func.func @transform_4(%arg0: i32) -> (i32, i32) {
    %c0_i32 = arith.constant 0 : i32
    %c0_i32_0 = arith.constant 0 : i32
    %c0_i32_1 = arith.constant 0 : i32
    return %c0_i32, %c0_i32_0 : i32, i32
  }
  func.func @transform_5(%arg0: i32) -> (i32, i32) {
    %c0_i32 = arith.constant 0 : i32
    %c0_i32_0 = arith.constant 0 : i32
    %c0_i32_1 = arith.constant 0 : i32
    return %c0_i32, %c0_i32_0 : i32, i32
  }
  func.func @transform_6(%arg0: i32) -> (i32, i32) {
    %c0_i32 = arith.constant 0 : i32
    %c0_i32_0 = arith.constant 0 : i32
    %c0_i32_1 = arith.constant 0 : i32
    return %c0_i32, %c0_i32_0 : i32, i32
  }
  func.func @transform_7(%arg0: i32) -> (i32, i32) {
    %c0_i32 = arith.constant 0 : i32
    %c0_i32_0 = arith.constant 0 : i32
    %c0_i32_1 = arith.constant 0 : i32
    return %c0_i32, %c0_i32_0 : i32, i32
  }
  func.func @transform_8(%arg0: i32) -> (i32, i32) {
    %c0_i32 = arith.constant 0 : i32
    %c0_i32_0 = arith.constant 0 : i32
    return %arg0, %c0_i32 : i32, i32
  }
}

module attributes {stable_mosaic.version = 11 : i64} {
  func.func @_wavelet_kernel(%arg0: i32, %arg1: memref<8x256xf32, #tpu.memory_space<vmem>>, %arg2: memref<256x256xf32, #tpu.memory_space<vmem>>, %arg3: memref<256x8xf32, #tpu.memory_space<vmem>>, %arg4: memref<8x128xf32, #tpu.memory_space<vmem>>, %arg5: memref<20x160xf32, #tpu.memory_space<vmem>>, %arg6: memref<1x160xf32, #tpu.memory_space<vmem>>, %arg7: memref<160x128xf32, #tpu.memory_space<vmem>>, %arg8: memref<1x128xf32, #tpu.memory_space<vmem>>, %arg9: memref<8x128xf32, #tpu.memory_space<vmem>>) attributes {dimension_semantics = [#tpu.dimension_semantics<parallel>], iteration_bounds = array<i64: 1>, scalar_prefetch = 0 : i64, scratch_operands = 0 : i64, tpu.core_type = #tpu.core_type<tc>, window_params = [{transform_indices = @transform_0, window_bounds = array<i64: 8, 256>}, {pipeline_mode = #tpu.pipeline_mode<synchronous>, transform_indices = @transform_1, window_bounds = array<i64: 256, 256>}, {pipeline_mode = #tpu.pipeline_mode<synchronous>, transform_indices = @transform_2, window_bounds = array<i64: 256, 8>}, {pipeline_mode = #tpu.pipeline_mode<synchronous>, transform_indices = @transform_3, window_bounds = array<i64: 8, 128>}, {pipeline_mode = #tpu.pipeline_mode<synchronous>, transform_indices = @transform_4, window_bounds = array<i64: 20, 160>}, {pipeline_mode = #tpu.pipeline_mode<synchronous>, transform_indices = @transform_5, window_bounds = array<i64: 1, 160>}, {pipeline_mode = #tpu.pipeline_mode<synchronous>, transform_indices = @transform_6, window_bounds = array<i64: 160, 128>}, {pipeline_mode = #tpu.pipeline_mode<synchronous>, transform_indices = @transform_7, window_bounds = array<i64: 1, 128>}, {transform_indices = @transform_8, window_bounds = array<i64: 8, 128>}]} {
    %c0 = arith.constant 0 : index
    %c0_0 = arith.constant 0 : index
    %0 = vector.load %arg1[%c0, %c0_0] : memref<8x256xf32, #tpu.memory_space<vmem>>, vector<8x256xf32>
    %c0_1 = arith.constant 0 : index
    %c0_2 = arith.constant 0 : index
    %1 = vector.load %arg2[%c0_1, %c0_2] : memref<256x256xf32, #tpu.memory_space<vmem>>, vector<256x256xf32>
    %cst = arith.constant dense<0.000000e+00> : vector<8x256xf32>
    %2 = tpu.matmul %0, %1, %cst {dimension_numbers = #tpu.dot_dimension_numbers<[1], [0], [0], [1], [0, 0, 1, 1], [], []>} : vector<8x256xf32>, vector<256x256xf32>, vector<8x256xf32> -> vector<8x256xf32>
    %3 = arith.mulf %2, %2 : vector<8x256xf32>
    %c0_3 = arith.constant 0 : index
    %c0_4 = arith.constant 0 : index
    %4 = vector.load %arg3[%c0_3, %c0_4] : memref<256x8xf32, #tpu.memory_space<vmem>>, vector<256x8xf32>
    %cst_5 = arith.constant dense<0.000000e+00> : vector<8x8xf32>
    %5 = tpu.matmul %3, %4, %cst_5 {dimension_numbers = #tpu.dot_dimension_numbers<[1], [0], [0], [1], [0, 0, 1, 1], [], []>} : vector<8x256xf32>, vector<256x8xf32>, vector<8x8xf32> -> vector<8x8xf32>
    %6 = vector.extract_strided_slice %5 {offsets = [0, 0], sizes = [8, 5], strides = [1, 1]} : vector<8x8xf32> to vector<8x5xf32>
    %cst_6 = arith.constant 0.000000e+00 : f32
    %7 = vector.broadcast %cst_6 : f32 to vector<8x5xf32>
    %8 = arith.maximumf %6, %7 : vector<8x5xf32>
    %9 = math.sqrt %8 : vector<8x5xf32>
    %10 = vector.extract_strided_slice %2 {offsets = [0, 197], sizes = [8, 5], strides = [1, 1]} : vector<8x256xf32> to vector<8x5xf32>
    %11 = vector.extract_strided_slice %2 {offsets = [0, 0], sizes = [8, 128], strides = [1, 1]} : vector<8x256xf32> to vector<8x128xf32>
    %12 = vector.extract_strided_slice %2 {offsets = [0, 128], sizes = [8, 128], strides = [1, 1]} : vector<8x256xf32> to vector<8x128xf32>
    %c0_7 = arith.constant 0 : index
    %c0_8 = arith.constant 0 : index
    %13 = vector.load %arg4[%c0_7, %c0_8] : memref<8x128xf32, #tpu.memory_space<vmem>>, vector<1x128xf32>
    %14 = vector.broadcast %13 : vector<1x128xf32> to vector<8x128xf32>
    %15 = arith.addf %11, %14 : vector<8x128xf32>
    %cst_9 = arith.constant dense<0xFF800000> : vector<8xf32>
    %16 = vector.multi_reduction <maximumf>, %15, %cst_9 [1] : vector<8x128xf32> to vector<8xf32>
    %17 = vector.shape_cast %16 : vector<8xf32> to vector<8x1xf32>
    %18 = vector.broadcast %13 : vector<1x128xf32> to vector<8x128xf32>
    %19 = arith.subf %11, %18 : vector<8x128xf32>
    %cst_10 = arith.constant dense<0x7F800000> : vector<8xf32>
    %20 = vector.multi_reduction <minimumf>, %19, %cst_10 [1] : vector<8x128xf32> to vector<8xf32>
    %21 = vector.shape_cast %20 : vector<8xf32> to vector<8x1xf32>
    %c1 = arith.constant 1 : index
    %c0_11 = arith.constant 0 : index
    %22 = vector.load %arg4[%c1, %c0_11] : memref<8x128xf32, #tpu.memory_space<vmem>>, vector<1x128xf32>
    %23 = vector.broadcast %22 : vector<1x128xf32> to vector<8x128xf32>
    %24 = arith.addf %11, %23 : vector<8x128xf32>
    %cst_12 = arith.constant dense<0xFF800000> : vector<8xf32>
    %25 = vector.multi_reduction <maximumf>, %24, %cst_12 [1] : vector<8x128xf32> to vector<8xf32>
    %26 = vector.shape_cast %25 : vector<8xf32> to vector<8x1xf32>
    %27 = vector.broadcast %22 : vector<1x128xf32> to vector<8x128xf32>
    %28 = arith.subf %11, %27 : vector<8x128xf32>
    %cst_13 = arith.constant dense<0x7F800000> : vector<8xf32>
    %29 = vector.multi_reduction <minimumf>, %28, %cst_13 [1] : vector<8x128xf32> to vector<8xf32>
    %30 = vector.shape_cast %29 : vector<8xf32> to vector<8x1xf32>
    %c2 = arith.constant 2 : index
    %c0_14 = arith.constant 0 : index
    %31 = vector.load %arg4[%c2, %c0_14] : memref<8x128xf32, #tpu.memory_space<vmem>>, vector<1x128xf32>
    %32 = vector.broadcast %31 : vector<1x128xf32> to vector<8x128xf32>
    %33 = arith.addf %11, %32 : vector<8x128xf32>
    %cst_15 = arith.constant dense<0xFF800000> : vector<8xf32>
    %34 = vector.multi_reduction <maximumf>, %33, %cst_15 [1] : vector<8x128xf32> to vector<8xf32>
    %35 = vector.shape_cast %34 : vector<8xf32> to vector<8x1xf32>
    %36 = vector.broadcast %31 : vector<1x128xf32> to vector<8x128xf32>
    %37 = arith.subf %11, %36 : vector<8x128xf32>
    %cst_16 = arith.constant dense<0x7F800000> : vector<8xf32>
    %38 = vector.multi_reduction <minimumf>, %37, %cst_16 [1] : vector<8x128xf32> to vector<8xf32>
    %39 = vector.shape_cast %38 : vector<8xf32> to vector<8x1xf32>
    %c3 = arith.constant 3 : index
    %c0_17 = arith.constant 0 : index
    %40 = vector.load %arg4[%c3, %c0_17] : memref<8x128xf32, #tpu.memory_space<vmem>>, vector<1x128xf32>
    %41 = vector.broadcast %40 : vector<1x128xf32> to vector<8x128xf32>
    %42 = arith.addf %11, %41 : vector<8x128xf32>
    %cst_18 = arith.constant dense<0xFF800000> : vector<8xf32>
    %43 = vector.multi_reduction <maximumf>, %42, %cst_18 [1] : vector<8x128xf32> to vector<8xf32>
    %44 = vector.shape_cast %43 : vector<8xf32> to vector<8x1xf32>
    %45 = vector.broadcast %40 : vector<1x128xf32> to vector<8x128xf32>
    %46 = arith.subf %11, %45 : vector<8x128xf32>
    %cst_19 = arith.constant dense<0x7F800000> : vector<8xf32>
    %47 = vector.multi_reduction <minimumf>, %46, %cst_19 [1] : vector<8x128xf32> to vector<8xf32>
    %48 = vector.shape_cast %47 : vector<8xf32> to vector<8x1xf32>
    %c4 = arith.constant 4 : index
    %c0_20 = arith.constant 0 : index
    %49 = vector.load %arg4[%c4, %c0_20] : memref<8x128xf32, #tpu.memory_space<vmem>>, vector<1x128xf32>
    %50 = vector.broadcast %49 : vector<1x128xf32> to vector<8x128xf32>
    %51 = arith.addf %12, %50 : vector<8x128xf32>
    %cst_21 = arith.constant dense<0xFF800000> : vector<8xf32>
    %52 = vector.multi_reduction <maximumf>, %51, %cst_21 [1] : vector<8x128xf32> to vector<8xf32>
    %53 = vector.shape_cast %52 : vector<8xf32> to vector<8x1xf32>
    %54 = vector.broadcast %49 : vector<1x128xf32> to vector<8x128xf32>
    %55 = arith.subf %12, %54 : vector<8x128xf32>
    %cst_22 = arith.constant dense<0x7F800000> : vector<8xf32>
    %56 = vector.multi_reduction <minimumf>, %55, %cst_22 [1] : vector<8x128xf32> to vector<8xf32>
    %57 = vector.shape_cast %56 : vector<8xf32> to vector<8x1xf32>
    %58 = tpu.concatenate %17, %26, %35, %44, %53 in 1 : vector<8x1xf32>, vector<8x1xf32>, vector<8x1xf32>, vector<8x1xf32>, vector<8x1xf32> -> vector<8x5xf32>
    %59 = arith.addf %58, %10 : vector<8x5xf32>
    %60 = tpu.concatenate %21, %30, %39, %48, %57 in 1 : vector<8x1xf32>, vector<8x1xf32>, vector<8x1xf32>, vector<8x1xf32>, vector<8x1xf32> -> vector<8x5xf32>
    %61 = arith.addf %60, %10 : vector<8x5xf32>
    %62 = tpu.concatenate %10, %9, %59, %61 in 1 : vector<8x5xf32>, vector<8x5xf32>, vector<8x5xf32>, vector<8x5xf32> -> vector<8x20xf32>
    %c0_23 = arith.constant 0 : index
    %c0_24 = arith.constant 0 : index
    %63 = vector.load %arg5[%c0_23, %c0_24] : memref<20x160xf32, #tpu.memory_space<vmem>>, vector<20x160xf32>
    %cst_25 = arith.constant dense<0.000000e+00> : vector<8x160xf32>
    %64 = tpu.matmul %62, %63, %cst_25 {dimension_numbers = #tpu.dot_dimension_numbers<[1], [0], [0], [1], [0, 0, 1, 1], [], []>} : vector<8x20xf32>, vector<20x160xf32>, vector<8x160xf32> -> vector<8x160xf32>
    %c0_26 = arith.constant 0 : index
    %c0_27 = arith.constant 0 : index
    %65 = vector.load %arg6[%c0_26, %c0_27] : memref<1x160xf32, #tpu.memory_space<vmem>>, vector<1x160xf32>
    %66 = vector.broadcast %65 : vector<1x160xf32> to vector<8x160xf32>
    %67 = arith.addf %64, %66 : vector<8x160xf32>
    %cst_28 = arith.constant 0.000000e+00 : f32
    %68 = vector.broadcast %cst_28 : f32 to vector<8x160xf32>
    %69 = arith.maximumf %67, %68 : vector<8x160xf32>
    %c0_29 = arith.constant 0 : index
    %c0_30 = arith.constant 0 : index
    %70 = vector.load %arg7[%c0_29, %c0_30] : memref<160x128xf32, #tpu.memory_space<vmem>>, vector<160x128xf32>
    %cst_31 = arith.constant dense<0.000000e+00> : vector<8x128xf32>
    %71 = tpu.matmul %69, %70, %cst_31 {dimension_numbers = #tpu.dot_dimension_numbers<[1], [0], [0], [1], [0, 0, 1, 1], [], []>} : vector<8x160xf32>, vector<160x128xf32>, vector<8x128xf32> -> vector<8x128xf32>
    %c0_32 = arith.constant 0 : index
    %c0_33 = arith.constant 0 : index
    %72 = vector.load %arg8[%c0_32, %c0_33] : memref<1x128xf32, #tpu.memory_space<vmem>>, vector<1x128xf32>
    %73 = vector.broadcast %72 : vector<1x128xf32> to vector<8x128xf32>
    %74 = arith.addf %71, %73 : vector<8x128xf32>
    %cst_34 = arith.constant 0.000000e+00 : f32
    %75 = vector.broadcast %cst_34 : f32 to vector<8x128xf32>
    %76 = arith.maximumf %74, %75 : vector<8x128xf32>
    %c0_35 = arith.constant 0 : index
    %c0_36 = arith.constant 0 : index
    %77 = vector.load %arg9[%c0_35, %c0_36] : memref<8x128xf32, #tpu.memory_space<vmem>>, vector<8x128xf32>
    tpu.vector_store %arg9[%c0_35, %c0_36], %76 {strides = array<i32>} : memref<8x128xf32, #tpu.memory_space<vmem>>, vector<8x128xf32>,
    return
  }
  func.func @transform_0(%arg0: i32) -> (i32, i32) {
    %c0_i32 = arith.constant 0 : i32
    %c0_i32_0 = arith.constant 0 : i32
    return %arg0, %c0_i32 : i32, i32
  }
  func.func @transform_1(%arg0: i32) -> (i32, i32) {
    %c0_i32 = arith.constant 0 : i32
    %c0_i32_0 = arith.constant 0 : i32
    %c0_i32_1 = arith.constant 0 : i32
    return %c0_i32, %c0_i32_0 : i32, i32
  }
  func.func @transform_2(%arg0: i32) -> (i32, i32) {
    %c0_i32 = arith.constant 0 : i32
    %c0_i32_0 = arith.constant 0 : i32
    %c0_i32_1 = arith.constant 0 : i32
    return %c0_i32, %c0_i32_0 : i32, i32
  }
  func.func @transform_3(%arg0: i32) -> (i32, i32) {
    %c0_i32 = arith.constant 0 : i32
    %c0_i32_0 = arith.constant 0 : i32
    %c0_i32_1 = arith.constant 0 : i32
    return %c0_i32, %c0_i32_0 : i32, i32
  }
  func.func @transform_4(%arg0: i32) -> (i32, i32) {
    %c0_i32 = arith.constant 0 : i32
    %c0_i32_0 = arith.constant 0 : i32
    %c0_i32_1 = arith.constant 0 : i32
    return %c0_i32, %c0_i32_0 : i32, i32
  }
  func.func @transform_5(%arg0: i32) -> (i32, i32) {
    %c0_i32 = arith.constant 0 : i32
    %c0_i32_0 = arith.constant 0 : i32
    %c0_i32_1 = arith.constant 0 : i32
    return %c0_i32, %c0_i32_0 : i32, i32
  }
  func.func @transform_6(%arg0: i32) -> (i32, i32) {
    %c0_i32 = arith.constant 0 : i32
    %c0_i32_0 = arith.constant 0 : i32
    %c0_i32_1 = arith.constant 0 : i32
    return %c0_i32, %c0_i32_0 : i32, i32
  }
  func.func @transform_7(%arg0: i32) -> (i32, i32) {
    %c0_i32 = arith.constant 0 : i32
    %c0_i32_0 = arith.constant 0 : i32
    %c0_i32_1 = arith.constant 0 : i32
    return %c0_i32, %c0_i32_0 : i32, i32
  }
  func.func @transform_8(%arg0: i32) -> (i32, i32) {
    %c0_i32 = arith.constant 0 : i32
    %c0_i32_0 = arith.constant 0 : i32
    return %arg0, %c0_i32 : i32, i32
  }
}

</mosaic_0001>

<llo_original>
// kernel: tpu_custom_call.1
$region0: #{tpu_custom_call.1}
  #allocation0 [shape = 'u32[]', space=smem, size = 0x4, offset = 0x4, fixed_abs, tag = 'smem constant byte address 0x4 - core index']
  #allocation1 [shape = 'u32[144,128]{1,0:T(1,128)}', space=vmem, size = 0x12000, scoped, tag = 'internal scratch']
  %s0 = inlined_call_operand.vmem [shape: f32[8,256], index: 0, kind: input, shape index: {}]
  %s1 = inlined_call_operand.hbm [shape: f32[256,256], index: 1, kind: input, shape index: {}]
  %s2 = inlined_call_operand.vmem [shape: f32[256,8], index: 2, kind: input, shape index: {}]
  %s3 = inlined_call_operand.vmem [shape: f32[8,128], index: 3, kind: input, shape index: {}]
  %s4 = inlined_call_operand.vmem [shape: f32[20,160], index: 4, kind: input, shape index: {}]
  %s5 = inlined_call_operand.vmem [shape: f32[1,160], index: 5, kind: input, shape index: {}]
  %s6 = inlined_call_operand.vmem [shape: f32[160,128], index: 6, kind: input, shape index: {}]
  %s7 = inlined_call_operand.vmem [shape: f32[1,128], index: 7, kind: input, shape index: {}]
  %s8 = inlined_call_operand.hbm [shape: f32[8,128], index: 8, kind: output, shape index: {}]
  %s9 = sld [smem:[#allocation0]]
  $region46: #{tpu_custom_call.1} parent=0
    _
  %s11 = ssub.s32 1, %s9
  %s12 = scalar_select 0, %s11, %s9
  $region1: #{tpu_custom_call.1} parent=0
    #allocation2 [shape = 'u8[262144]{0}', space=vmem, size = 0x40000, scoped, tag = 'input window, operand 1, single buffered']
    #allocation3 [shape = 's32[1]{0}', space=sflag, size = 0x4, scoped, tag = 'scoped memory for tpu_custom_call.1']
    #allocation4 [shape = 's32[1]{0}', space=sflag, size = 0x4, scoped, tag = 'scoped memory for tpu_custom_call.1']
    #allocation5 [shape = 'u8[4096]{0}', space=vmem, size = 0x1000, scoped, tag = 'output window, operand 0, single buffered']
    %13 = vsyncpa [#allocation3], 0
    %14 = vsyncpa [#allocation4], 0
    // Predicated region
    $region2: #{tpu_custom_call.1} parent=1 // pred_check
      _
    $region3: #{tpu_custom_call.1} parent=1 // pred_check_branch
      %16 = sbr.rel (0) target = $region5
    $region4: #{tpu_custom_call.1} parent=1 // pred_region
      _
    $region5: #{tpu_custom_call.1} parent=1 // pred_fallthru
      _
    // Predicated region
    $region6: #{tpu_custom_call.1} parent=1 // pred_check
      _
    $region7: #{tpu_custom_call.1} parent=1 // pred_check_branch
      %18 = sbr.rel (0) target = $region9
    $region8: #{tpu_custom_call.1} parent=1 // pred_region
      %s20 = ssub.s32 8192, 8192
      %21 = vsyncadd [#allocation3], %s20
      %s22 = sshll.u32 [#allocation2], 4
      %s23 = int_to_ptr.vmem [resolvable:$true] %s22
      %28 = dma.hbm_to_vmem [thread:$0]  %s1, 8192, %s23, [#allocation3], 256, 256, 16
    $region9: #{tpu_custom_call.1} parent=1 // pred_fallthru
      _
    // Predicated region
    $region10: #{tpu_custom_call.1} parent=1 // pred_check
      _
    $region11: #{tpu_custom_call.1} parent=1 // pred_check_branch
      %30 = sbr.rel (0) target = $region13
    $region12: #{tpu_custom_call.1} parent=1 // pred_region
      _
    $region13: #{tpu_custom_call.1} parent=1 // pred_fallthru
      _
    // Predicated region
    $region14: #{tpu_custom_call.1} parent=1 // pred_check
      _
    $region15: #{tpu_custom_call.1} parent=1 // pred_check_branch
      %32 = sbr.rel (0) target = $region17
    $region16: #{tpu_custom_call.1} parent=1 // pred_region
      _
    $region17: #{tpu_custom_call.1} parent=1 // pred_fallthru
      _
    // Predicated region
    $region18: #{tpu_custom_call.1} parent=1 // pred_check
      _
    $region19: #{tpu_custom_call.1} parent=1 // pred_check_branch
      %34 = sbr.rel (0) target = $region21
    $region20: #{tpu_custom_call.1} parent=1 // pred_region
      _
    $region21: #{tpu_custom_call.1} parent=1 // pred_fallthru
      _
    // Predicated region
    $region22: #{tpu_custom_call.1} parent=1 // pred_check
      _
    $region23: #{tpu_custom_call.1} parent=1 // pred_check_branch
      %36 = sbr.rel (0) target = $region25
    $region24: #{tpu_custom_call.1} parent=1 // pred_region
      _
    $region25: #{tpu_custom_call.1} parent=1 // pred_fallthru
      _
    // Predicated region
    $region26: #{tpu_custom_call.1} parent=1 // pred_check
      _
    $region27: #{tpu_custom_call.1} parent=1 // pred_check_branch
      %38 = sbr.rel (0) target = $region29
    $region28: #{tpu_custom_call.1} parent=1 // pred_region
      _
    $region29: #{tpu_custom_call.1} parent=1 // pred_fallthru
      _
    // Predicated region
    $region30: #{tpu_custom_call.1} parent=1 // pred_check
      _
    $region31: #{tpu_custom_call.1} parent=1 // pred_check_branch
      %40 = sbr.rel (0) target = $region33
    $region32: #{tpu_custom_call.1} parent=1 // pred_region
      _
    $region33: #{tpu_custom_call.1} parent=1 // pred_fallthru
      _
    // Predicated region
    $region34: #{tpu_custom_call.1} parent=1 // pred_check
      _
    $region35: #{tpu_custom_call.1} parent=1 // pred_check_branch
      %42 = sbr.rel (0) target = $region37
    $region36: #{tpu_custom_call.1} parent=1 // pred_region
      %43 = dma.done [#allocation3], 8192
    $region37: #{tpu_custom_call.1} parent=1 // pred_fallthru
      _
    %v44 = vld [vmem:[%s0] sm:$0xff]
    %v45 = vld [vmem:[%s0 + $0x8] sm:$0xff]
    %v46 = vld [vmem:[#allocation2] sm:$0xff]
    %v47 = vld [vmem:[#allocation2 + $0x8] sm:$0xff]
    %v48 = vld [vmem:[#allocation2 + $0x10] sm:$0xff]
    %v49 = vld [vmem:[#allocation2 + $0x18] sm:$0xff]
    %v50 = vld [vmem:[#allocation2 + $0x20] sm:$0xff]
    %v51 = vld [vmem:[#allocation2 + $0x28] sm:$0xff]
    %v52 = vld [vmem:[#allocation2 + $0x30] sm:$0xff]
    %v53 = vld [vmem:[#allocation2 + $0x38] sm:$0xff]
    %v54 = vld [vmem:[#allocation2 + $0x40] sm:$0xff]
    %v55 = vld [vmem:[#allocation2 + $0x48] sm:$0xff]
    %v56 = vld [vmem:[#allocation2 + $0x50] sm:$0xff]
    %v57 = vld [vmem:[#allocation2 + $0x58] sm:$0xff]
    %v58 = vld [vmem:[#allocation2 + $0x60] sm:$0xff]
    %v59 = vld [vmem:[#allocation2 + $0x68] sm:$0xff]
    %v60 = vld [vmem:[#allocation2 + $0x70] sm:$0xff]
    %v61 = vld [vmem:[#allocation2 + $0x78] sm:$0xff]
    %v62 = vld [vmem:[#allocation2 + $0x80] sm:$0xff]
    %v63 = vld [vmem:[#allocation2 + $0x88] sm:$0xff]
    %v64 = vld [vmem:[#allocation2 + $0x90] sm:$0xff]
    %v65 = vld [vmem:[#allocation2 + $0x98] sm:$0xff]
    %v66 = vld [vmem:[#allocation2 + $0xa0] sm:$0xff]
    %v67 = vld [vmem:[#allocation2 + $0xa8] sm:$0xff]
    %v68 = vld [vmem:[#allocation2 + $0xb0] sm:$0xff]
    %v69 = vld [vmem:[#allocation2 + $0xb8] sm:$0xff]
    %v70 = vld [vmem:[#allocation2 + $0xc0] sm:$0xff]
    %v71 = vld [vmem:[#allocation2 + $0xc8] sm:$0xff]
    %v72 = vld [vmem:[#allocation2 + $0xd0] sm:$0xff]
    %v73 = vld [vmem:[#allocation2 + $0xd8] sm:$0xff]
    %v74 = vld [vmem:[#allocation2 + $0xe0] sm:$0xff]
    %v75 = vld [vmem:[#allocation2 + $0xe8] sm:$0xff]
    %v76 = vld [vmem:[#allocation2 + $0xf0] sm:$0xff]
    %v77 = vld [vmem:[#allocation2 + $0xf8] sm:$0xff]
    %v78 = vld [vmem:[#allocation2 + $0x100] sm:$0xff]
    %v79 = vld [vmem:[#allocation2 + $0x108] sm:$0xff]
    %v80 = vld [vmem:[#allocation2 + $0x110] sm:$0xff]
    %v81 = vld [vmem:[#allocation2 + $0x118] sm:$0xff]
    %v82 = vld [vmem:[#allocation2 + $0x120] sm:$0xff]
    %v83 = vld [vmem:[#allocation2 + $0x128] sm:$0xff]
    %v84 = vld [vmem:[#allocation2 + $0x130] sm:$0xff]
    %v85 = vld [vmem:[#allocation2 + $0x138] sm:$0xff]
    %v86 = vld [vmem:[#allocation2 + $0x140] sm:$0xff]
    %v87 = vld [vmem:[#allocation2 + $0x148] sm:$0xff]
    %v88 = vld [vmem:[#allocation2 + $0x150] sm:$0xff]
    %v89 = vld [vmem:[#allocation2 + $0x158] sm:$0xff]
    %v90 = vld [vmem:[#allocation2 + $0x160] sm:$0xff]
    %v91 = vld [vmem:[#allocation2 + $0x168] sm:$0xff]
    %v92 = vld [vmem:[#allocation2 + $0x170] sm:$0xff]
    %v93 = vld [vmem:[#allocation2 + $0x178] sm:$0xff]
    %v94 = vld [vmem:[#allocation2 + $0x180] sm:$0xff]
    %v95 = vld [vmem:[#allocation2 + $0x188] sm:$0xff]
    %v96 = vld [vmem:[#allocation2 + $0x190] sm:$0xff]
    %v97 = vld [vmem:[#allocation2 + $0x198] sm:$0xff]
    %v98 = vld [vmem:[#allocation2 + $0x1a0] sm:$0xff]
    %v99 = vld [vmem:[#allocation2 + $0x1a8] sm:$0xff]
    %v100 = vld [vmem:[#allocation2 + $0x1b0] sm:$0xff]
    %v101 = vld [vmem:[#allocation2 + $0x1b8] sm:$0xff]
    %v102 = vld [vmem:[#allocation2 + $0x1c0] sm:$0xff]
    %v103 = vld [vmem:[#allocation2 + $0x1c8] sm:$0xff]
    %v104 = vld [vmem:[#allocation2 + $0x1d0] sm:$0xff]
    %v105 = vld [vmem:[#allocation2 + $0x1d8] sm:$0xff]
    %v106 = vld [vmem:[#allocation2 + $0x1e0] sm:$0xff]
    %v107 = vld [vmem:[#allocation2 + $0x1e8] sm:$0xff]
    %v108 = vld [vmem:[#allocation2 + $0x1f0] sm:$0xff]
    %v109 = vld [vmem:[#allocation2 + $0x1f8] sm:$0xff]
    %110 = vmatprep.subr.mxu0 %v77
    %111 = vmatpush1.msra.mxu0 %v76
    %112 = vmatprep.subr.mxu0 %v75
    %113 = vmatpush1.msra.mxu0 %v74
    %114 = vmatprep.subr.mxu0 %v73
    %115 = vmatpush1.msra.mxu0 %v72
    %116 = vmatprep.subr.mxu0 %v71
    %117 = vmatpush1.msra.mxu0 %v70
    %118 = vmatprep.subr.mxu0 %v69
    %119 = vmatpush1.msra.mxu0 %v68
    %120 = vmatprep.subr.mxu0 %v67
    %121 = vmatpush1.msra.mxu0 %v66
    %122 = vmatprep.subr.mxu0 %v65
    %123 = vmatpush1.msra.mxu0 %v64
    %124 = vmatprep.subr.mxu0 %v63
    %125 = vmatpush1.msra.mxu0 %v62
    %126 = vmatprep.subr.mxu0 %v61
    %127 = vmatpush1.msra.mxu0 %v60
    %128 = vmatprep.subr.mxu0 %v59
    %129 = vmatpush1.msra.mxu0 %v58
    %130 = vmatprep.subr.mxu0 %v57
    %131 = vmatpush1.msra.mxu0 %v56
    %132 = vmatprep.subr.mxu0 %v55
    %133 = vmatpush1.msra.mxu0 %v54
    %134 = vmatprep.subr.mxu0 %v53
    %135 = vmatpush1.msra.mxu0 %v52
    %136 = vmatprep.subr.mxu0 %v51
    %137 = vmatpush1.msra.mxu0 %v50
    %138 = vmatprep.subr.mxu0 %v49
    %139 = vmatpush1.msra.mxu0 %v48
    %140 = vmatprep.subr.mxu0 %v47
    %141 = vmatpush1.msra.mxu0 %v46
    %142 = vmatprep.subr.mxu0 %v109
    %143 = vmatpush2.msra.mxu0 %v108
    %144 = vmatprep.subr.mxu0 %v107
    %145 = vmatpush2.msra.mxu0 %v106
    %146 = vmatprep.subr.mxu0 %v105
    %147 = vmatpush2.msra.mxu0 %v104
    %148 = vmatprep.subr.mxu0 %v103
    %149 = vmatpush2.msra.mxu0 %v102
    %150 = vmatprep.subr.mxu0 %v101
    %151 = vmatpush2.msra.mxu0 %v100
    %152 = vmatprep.subr.mxu0 %v99
    %153 = vmatpush2.msra.mxu0 %v98
    %154 = vmatprep.subr.mxu0 %v97
    %155 = vmatpush2.msra.mxu0 %v96
    %156 = vmatprep.subr.mxu0 %v95
    %157 = vmatpush2.msra.mxu0 %v94
    %158 = vmatprep.subr.mxu0 %v93
    %159 = vmatpush2.msra.mxu0 %v92
    %160 = vmatprep.subr.mxu0 %v91
    %161 = vmatpush2.msra.mxu0 %v90
    %162 = vmatprep.subr.mxu0 %v89
    %163 = vmatpush2.msra.mxu0 %v88
    %164 = vmatprep.subr.mxu0 %v87
    %165 = vmatpush2.msra.mxu0 %v86
    %166 = vmatprep.subr.mxu0 %v85
    %167 = vmatpush2.msra.mxu0 %v84
    %168 = vmatprep.subr.mxu0 %v83
    %169 = vmatpush2.msra.mxu0 %v82
    %170 = vmatprep.subr.mxu0 %v81
    %171 = vmatpush2.msra.mxu0 %v80
    %172 = vmatprep.subr.mxu0 %v79
    %173 = vmatpush2.msra.mxu0 %v78
    %174 = vmatprep.mubr.f32.mxu0 %v45
    %175 = vmatmul.mubr.f32.gmra.mxu0 %v44
    %v176 = vpop.f32.mrf.mxu0
    %v177 = vadd.f32 0.0, %v176
    %v178 = vpop.f32.mrf.mxu0
    %v179 = vadd.f32 0.0, %v178
    %180 = vdwg.mxu0
    %v181 = vmul.f32 %v177, %v177
    %v182 = vmul.f32 %v179, %v179
    %v183 = vld [vmem:[%s2] sm:$0xff]
    %v184 = vld [vmem:[%s2 + $0x8] sm:$0xff]
    %v185 = vld [vmem:[%s2 + $0x10] sm:$0xff]
    %v186 = vld [vmem:[%s2 + $0x18] sm:$0xff]
    %v187 = vld [vmem:[%s2 + $0x20] sm:$0xff]
    %v188 = vld [vmem:[%s2 + $0x28] sm:$0xff]
    %v189 = vld [vmem:[%s2 + $0x30] sm:$0xff]
    %v190 = vld [vmem:[%s2 + $0x38] sm:$0xff]
    %v191 = vld [vmem:[%s2 + $0x40] sm:$0xff]
    %v192 = vld [vmem:[%s2 + $0x48] sm:$0xff]
    %v193 = vld [vmem:[%s2 + $0x50] sm:$0xff]
    %v194 = vld [vmem:[%s2 + $0x58] sm:$0xff]
    %v195 = vld [vmem:[%s2 + $0x60] sm:$0xff]
    %v196 = vld [vmem:[%s2 + $0x68] sm:$0xff]
    %v197 = vld [vmem:[%s2 + $0x70] sm:$0xff]
    %v198 = vld [vmem:[%s2 + $0x78] sm:$0xff]
    %v199 = vld [vmem:[%s2 + $0x80] sm:$0xff]
    %v200 = vld [vmem:[%s2 + $0x88] sm:$0xff]
    %v201 = vld [vmem:[%s2 + $0x90] sm:$0xff]
    %v202 = vld [vmem:[%s2 + $0x98] sm:$0xff]
    %v203 = vld [vmem:[%s2 + $0xa0] sm:$0xff]
    %v204 = vld [vmem:[%s2 + $0xa8] sm:$0xff]
    %v205 = vld [vmem:[%s2 + $0xb0] sm:$0xff]
    %v206 = vld [vmem:[%s2 + $0xb8] sm:$0xff]
    %v207 = vld [vmem:[%s2 + $0xc0] sm:$0xff]
    %v208 = vld [vmem:[%s2 + $0xc8] sm:$0xff]
    %v209 = vld [vmem:[%s2 + $0xd0] sm:$0xff]
    %v210 = vld [vmem:[%s2 + $0xd8] sm:$0xff]
    %v211 = vld [vmem:[%s2 + $0xe0] sm:$0xff]
    %v212 = vld [vmem:[%s2 + $0xe8] sm:$0xff]
    %v213 = vld [vmem:[%s2 + $0xf0] sm:$0xff]
    %v214 = vld [vmem:[%s2 + $0xf8] sm:$0xff]
    %215 = vmatprep.subr.mxu0 0.0
    %216 = vmatpush1.msra.mxu0 %v198
    %217 = vmatprep.subr.mxu0 0.0
    %218 = vmatpush1.msra.mxu0 %v197
    %219 = vmatprep.subr.mxu0 0.0
    %220 = vmatpush1.msra.mxu0 %v196
    %221 = vmatprep.subr.mxu0 0.0
    %222 = vmatpush1.msra.mxu0 %v195
    %223 = vmatprep.subr.mxu0 0.0
    %224 = vmatpush1.msra.mxu0 %v194
    %225 = vmatprep.subr.mxu0 0.0
    %226 = vmatpush1.msra.mxu0 %v193
    %227 = vmatprep.subr.mxu0 0.0
    %228 = vmatpush1.msra.mxu0 %v192
    %229 = vmatprep.subr.mxu0 0.0
    %230 = vmatpush1.msra.mxu0 %v191
    %231 = vmatprep.subr.mxu0 0.0
    %232 = vmatpush1.msra.mxu0 %v190
    %233 = vmatprep.subr.mxu0 0.0
    %234 = vmatpush1.msra.mxu0 %v189
    %235 = vmatprep.subr.mxu0 0.0
    %236 = vmatpush1.msra.mxu0 %v188
    %237 = vmatprep.subr.mxu0 0.0
    %238 = vmatpush1.msra.mxu0 %v187
    %239 = vmatprep.subr.mxu0 0.0
    %240 = vmatpush1.msra.mxu0 %v186
    %241 = vmatprep.subr.mxu0 0.0
    %242 = vmatpush1.msra.mxu0 %v185
    %243 = vmatprep.subr.mxu0 0.0
    %244 = vmatpush1.msra.mxu0 %v184
    %245 = vmatprep.subr.mxu0 0.0
    %246 = vmatpush1.msra.mxu0 %v183
    %247 = vmatprep.subr.mxu0 0.0
    %248 = vmatpush2.msra.mxu0 %v214
    %249 = vmatprep.subr.mxu0 0.0
    %250 = vmatpush2.msra.mxu0 %v213
    %251 = vmatprep.subr.mxu0 0.0
    %252 = vmatpush2.msra.mxu0 %v212
    %253 = vmatprep.subr.mxu0 0.0
    %254 = vmatpush2.msra.mxu0 %v211
    %255 = vmatprep.subr.mxu0 0.0
    %256 = vmatpush2.msra.mxu0 %v210
    %257 = vmatprep.subr.mxu0 0.0
    %258 = vmatpush2.msra.mxu0 %v209
    %259 = vmatprep.subr.mxu0 0.0
    %260 = vmatpush2.msra.mxu0 %v208
    %261 = vmatprep.subr.mxu0 0.0
    %262 = vmatpush2.msra.mxu0 %v207
    %263 = vmatprep.subr.mxu0 0.0
    %264 = vmatpush2.msra.mxu0 %v206
    %265 = vmatprep.subr.mxu0 0.0
    %266 = vmatpush2.msra.mxu0 %v205
    %267 = vmatprep.subr.mxu0 0.0
    %268 = vmatpush2.msra.mxu0 %v204
    %269 = vmatprep.subr.mxu0 0.0
    %270 = vmatpush2.msra.mxu0 %v203
    %271 = vmatprep.subr.mxu0 0.0
    %272 = vmatpush2.msra.mxu0 %v202
    %273 = vmatprep.subr.mxu0 0.0
    %274 = vmatpush2.msra.mxu0 %v201
    %275 = vmatprep.subr.mxu0 0.0
    %276 = vmatpush2.msra.mxu0 %v200
    %277 = vmatprep.subr.mxu0 0.0
    %278 = vmatpush2.msra.mxu0 %v199
    %279 = vmatprep.mubr.f32.mxu0 %v182
    %280 = vmatmul.mubr.f32.gmra.mxu0 %v181
    %v281 = vpop.f32.mrf.mxu0
    %v282 = vadd.f32 0.0, %v281
    %v283 = vpop.f32.mrf.mxu0
    %284 = vdwg.mxu0
    %v285 = vmax.f32 %v282, 0.0
    %v286 = vrsqrt.pop %v285
    %v287 = vmul.f32 %v285, %v286
    %vm288 = vcmp.eq.f32.partialorder %v285, inf
    %v289 = vsel %vm288, %v285, %v287
    %vm290 = vcmp.eq.f32.partialorder %v285, 0.0
    %v291 = vand.u32 %v285, 2147483648
    %v292 = vsel %vm290, %v291, %v289
    %v293 = vld [vmem:[%s3] sm:$0x1]
    %v294 = vlaneseq
    %v295 = vshrl.u32 %v294, 7
    %v296 = vsub.s32 0, %v295
    %v297 = vrot.slane %v293, %v296
    %v298 = vadd.f32 %v177, %v297
    %299 = vmax.xlane.f32.xlu0 %v298
    %v300 = vpop.xlane.xlu0 %299
    %v301 = vsub.f32 %v177, %v297
    %302 = vmin.xlane.f32.xlu0 %v301
    %v303 = vpop.xlane.xlu0 %302
    %v304 = vld [vmem:[%s3 + $0x1] sm:$0x1]
    %v305 = vlaneseq
    %v306 = vshrl.u32 %v305, 7
    %v307 = vsub.s32 0, %v306
    %v308 = vrot.slane %v304, %v307
    %v309 = vadd.f32 %v177, %v308
    %310 = vmax.xlane.f32.xlu0 %v309
    %v311 = vpop.xlane.xlu0 %310
    %v312 = vsub.f32 %v177, %v308
    %313 = vmin.xlane.f32.xlu0 %v312
    %v314 = vpop.xlane.xlu0 %313
    %v315 = vld [vmem:[%s3 + $0x2] sm:$0x1]
    %v316 = vlaneseq
    %v317 = vshrl.u32 %v316, 7
    %v318 = vsub.s32 0, %v317
    %v319 = vrot.slane %v315, %v318
    %v320 = vadd.f32 %v177, %v319
    %321 = vmax.xlane.f32.xlu0 %v320
    %v322 = vpop.xlane.xlu0 %321
    %v323 = vsub.f32 %v177, %v319
    %324 = vmin.xlane.f32.xlu0 %v323
    %v325 = vpop.xlane.xlu0 %324
    %v326 = vld [vmem:[%s3 + $0x3] sm:$0x1]
    %v327 = vlaneseq
    %v328 = vshrl.u32 %v327, 7
    %v329 = vsub.s32 0, %v328
    %v330 = vrot.slane %v326, %v329
    %v331 = vadd.f32 %v177, %v330
    %332 = vmax.xlane.f32.xlu0 %v331
    %v333 = vpop.xlane.xlu0 %332
    %v334 = vsub.f32 %v177, %v330
    %335 = vmin.xlane.f32.xlu0 %v334
    %v336 = vpop.xlane.xlu0 %335
    %v337 = vld [vmem:[%s3 + $0x4] sm:$0x1]
    %v338 = vlaneseq
    %v339 = vshrl.u32 %v338, 7
    %v340 = vsub.s32 0, %v339
    %v341 = vrot.slane %v337, %v340
    %v342 = vadd.f32 %v179, %v341
    %343 = vmax.xlane.f32.xlu0 %v342
    %v344 = vpop.xlane.xlu0 %343
    %v345 = vsub.f32 %v179, %v341
    %346 = vmin.xlane.f32.xlu0 %v345
    %v347 = vpop.xlane.xlu0 %346
    %vm348 = vcmask 7168
    %v349 = vsel %vm348, %v300, %v311
    %vm350 = vcmask 15360
    %v351 = vsel %vm350, %v349, %v322
    %vm352 = vcmask 23552
    %v353 = vsel %vm352, %v351, %v333
    %vm354 = vcmask 31744
    %v355 = vsel %vm354, %v353, %v344
    %357 = vrot.lane.b32.xlu0 %v179, 59
    %v358 = vpop.permute.xlu0 %357
    %v360 = vadd.f32 %v355, %v358
    %v361 = vsel %vm348, %v303, %v314
    %v362 = vsel %vm350, %v361, %v325
    %v363 = vsel %vm352, %v362, %v336
    %v364 = vsel %vm354, %v363, %v347
    %v365 = vadd.f32 %v364, %v358
    %367 = vrot.lane.b32.xlu0 %v292, 5
    %v368 = vpop.permute.xlu0 %367
    %371 = vrot.lane.b32.xlu0 %v360, 10
    %v372 = vpop.permute.xlu0 %371
    %375 = vrot.lane.b32.xlu0 %v365, 15
    %v376 = vpop.permute.xlu0 %375
    %vm378 = vcmask 39936
    %v379 = vsel %vm378, %v358, %v368
    %vm380 = vcmask 80896
    %v381 = vsel %vm380, %v379, %v372
    %vm382 = vcmask 121856
    %v383 = vsel %vm382, %v381, %v376
    %v384 = vld [vmem:[%s4] sm:$0xff]
    %v385 = vld [vmem:[%s4 + $0x8] sm:$0xff]
    %v386 = vld [vmem:[%s4 + $0x10] sm:$0xff]
    %v387 = vld [vmem:[%s4 + $0x18] sm:$0xff]
    %v388 = vld [vmem:[%s4 + $0x20] sm:$0xf]
    %v389 = vld [vmem:[%s4 + $0x28] sm:$0xf]
    %v390 = vld [vmem:[%s5] sm:$0x3]
    %v392 = vlaneseq
    %v393 = vshrl.u32 %v392, 7
    %v394 = vsub.s32 0, %v393
    %v395 = vrot.slane %v390, %v394
    %v396 = vlaneseq
    %v397 = vshrl.u32 %v396, 7
    %v398 = vsub.s32 1, %v397
    %v399 = vrot.slane %v390, %v398
    %vm402 = vcmask 162816
    %v404 = vsel %vm402, %v383, 0
    %vm406 = vcmask 1043456
    %v408 = vsel %vm406, %v388, 0
    %v411 = vsel %vm406, %v389, 0
    %413 = vmatprep.subr.mxu0 0.0
    %414 = vmatpush1.msra.mxu0 0.0
    %415 = vmatprep.subr.mxu0 0.0
    %416 = vmatpush1.msra.mxu0 0.0
    %417 = vmatprep.subr.mxu0 0.0
    %418 = vmatpush1.msra.mxu0 0.0
    %419 = vmatprep.subr.mxu0 0.0
    %420 = vmatpush1.msra.mxu0 0.0
    %421 = vmatprep.subr.mxu0 0.0
    %422 = vmatpush1.msra.mxu0 0.0
    %423 = vmatprep.subr.mxu0 0.0
    %424 = vmatpush1.msra.mxu0 0.0
    %425 = vmatprep.subr.mxu0 0.0
    %426 = vmatpush1.msra.mxu0 0.0
    %427 = vmatprep.subr.mxu0 0.0
    %428 = vmatpush1.msra.mxu0 0.0
    %429 = vmatprep.subr.mxu0 0.0
    %430 = vmatpush1.msra.mxu0 0.0
    %431 = vmatprep.subr.mxu0 0.0
    %432 = vmatpush1.msra.mxu0 0.0
    %433 = vmatprep.subr.mxu0 0.0
    %434 = vmatpush1.msra.mxu0 0.0
    %435 = vmatprep.subr.mxu0 0.0
    %436 = vmatpush1.msra.mxu0 0.0
    %437 = vmatprep.subr.mxu0 0.0
    %438 = vmatpush1.msra.mxu0 0.0
    %439 = vmatprep.subr.mxu0 %v411
    %440 = vmatpush1.msra.mxu0 %v408
    %441 = vmatprep.subr.mxu0 %v387
    %442 = vmatpush1.msra.mxu0 %v386
    %443 = vmatprep.subr.mxu0 %v385
    %444 = vmatpush1.msra.mxu0 %v384
    %445 = vmatprep.subr.mxu0 0.0
    %446 = vmatpush2.msra.mxu0 0.0
    %447 = vmatprep.subr.mxu0 0.0
    %448 = vmatpush2.msra.mxu0 0.0
    %449 = vmatprep.subr.mxu0 0.0
    %450 = vmatpush2.msra.mxu0 0.0
    %451 = vmatprep.subr.mxu0 0.0
    %452 = vmatpush2.msra.mxu0 0.0
    %453 = vmatprep.subr.mxu0 0.0
    %454 = vmatpush2.msra.mxu0 0.0
    %455 = vmatprep.subr.mxu0 0.0
    %456 = vmatpush2.msra.mxu0 0.0
    %457 = vmatprep.subr.mxu0 0.0
    %458 = vmatpush2.msra.mxu0 0.0
    %459 = vmatprep.subr.mxu0 0.0
    %460 = vmatpush2.msra.mxu0 0.0
    %461 = vmatprep.subr.mxu0 0.0
    %462 = vmatpush2.msra.mxu0 0.0
    %463 = vmatprep.subr.mxu0 0.0
    %464 = vmatpush2.msra.mxu0 0.0
    %465 = vmatprep.subr.mxu0 0.0
    %466 = vmatpush2.msra.mxu0 0.0
    %467 = vmatprep.subr.mxu0 0.0
    %468 = vmatpush2.msra.mxu0 0.0
    %469 = vmatprep.subr.mxu0 0.0
    %470 = vmatpush2.msra.mxu0 0.0
    %471 = vmatprep.subr.mxu0 0.0
    %472 = vmatpush2.msra.mxu0 0.0
    %473 = vmatprep.subr.mxu0 0.0
    %474 = vmatpush2.msra.mxu0 0.0
    %475 = vmatprep.subr.mxu0 0.0
    %476 = vmatpush2.msra.mxu0 0.0
    %477 = vmatprep.mubr.f32.mxu0 0.0
    %478 = vmatmul.mubr.f32.gmra.mxu0 %v404
    %v479 = vpop.f32.mrf.mxu0
    %v480 = vadd.f32 %v395, %v479
    %v481 = vpop.f32.mrf.mxu0
    %v482 = vadd.f32 %v399, %v481
    %483 = vdwg.mxu0
    %v484 = vmax.f32 %v480, 0.0
    %v485 = vmax.f32 %v482, 0.0
    %v486 = vld [vmem:[%s6] sm:$0xff]
    %v487 = vld [vmem:[%s6 + $0x8] sm:$0xff]
    %v488 = vld [vmem:[%s6 + $0x10] sm:$0xff]
    %v489 = vld [vmem:[%s6 + $0x18] sm:$0xff]
    %v490 = vld [vmem:[%s6 + $0x20] sm:$0xff]
    %v491 = vld [vmem:[%s6 + $0x28] sm:$0xff]
    %v492 = vld [vmem:[%s6 + $0x30] sm:$0xff]
    %v493 = vld [vmem:[%s6 + $0x38] sm:$0xff]
    %v494 = vld [vmem:[%s6 + $0x40] sm:$0xff]
    %v495 = vld [vmem:[%s6 + $0x48] sm:$0xff]
    %v496 = vld [vmem:[%s6 + $0x50] sm:$0xff]
    %v497 = vld [vmem:[%s6 + $0x58] sm:$0xff]
    %v498 = vld [vmem:[%s6 + $0x60] sm:$0xff]
    %v499 = vld [vmem:[%s6 + $0x68] sm:$0xff]
    %v500 = vld [vmem:[%s6 + $0x70] sm:$0xff]
    %v501 = vld [vmem:[%s6 + $0x78] sm:$0xff]
    %v502 = vld [vmem:[%s6 + $0x80] sm:$0xff]
    %v503 = vld [vmem:[%s6 + $0x88] sm:$0xff]
    %v504 = vld [vmem:[%s6 + $0x90] sm:$0xff]
    %v505 = vld [vmem:[%s6 + $0x98] sm:$0xff]
    %v506 = vld [vmem:[%s7] sm:$0x1]
    %v508 = vlaneseq
    %v509 = vshrl.u32 %v508, 7
    %v510 = vsub.s32 0, %v509
    %v511 = vrot.slane %v506, %v510
    %vm513 = vcmask 261120
    %v515 = vsel %vm513, %v485, 0
    %517 = vmatprep.subr.mxu0 0.0
    %518 = vmatpush1.msra.mxu0 %v501
    %519 = vmatprep.subr.mxu0 0.0
    %520 = vmatpush1.msra.mxu0 %v500
    %521 = vmatprep.subr.mxu0 0.0
    %522 = vmatpush1.msra.mxu0 %v499
    %523 = vmatprep.subr.mxu0 0.0
    %524 = vmatpush1.msra.mxu0 %v498
    %525 = vmatprep.subr.mxu0 0.0
    %526 = vmatpush1.msra.mxu0 %v497
    %527 = vmatprep.subr.mxu0 0.0
    %528 = vmatpush1.msra.mxu0 %v496
    %529 = vmatprep.subr.mxu0 0.0
    %530 = vmatpush1.msra.mxu0 %v495
    %531 = vmatprep.subr.mxu0 0.0
    %532 = vmatpush1.msra.mxu0 %v494
    %533 = vmatprep.subr.mxu0 0.0
    %534 = vmatpush1.msra.mxu0 %v493
    %535 = vmatprep.subr.mxu0 0.0
    %536 = vmatpush1.msra.mxu0 %v492
    %537 = vmatprep.subr.mxu0 0.0
    %538 = vmatpush1.msra.mxu0 %v491
    %539 = vmatprep.subr.mxu0 0.0
    %540 = vmatpush1.msra.mxu0 %v490
    %541 = vmatprep.subr.mxu0 0.0
    %542 = vmatpush1.msra.mxu0 %v489
    %543 = vmatprep.subr.mxu0 0.0
    %544 = vmatpush1.msra.mxu0 %v488
    %545 = vmatprep.subr.mxu0 0.0
    %546 = vmatpush1.msra.mxu0 %v487
    %547 = vmatprep.subr.mxu0 0.0
    %548 = vmatpush1.msra.mxu0 %v486
    %549 = vmatprep.subr.mxu0 0.0
    %550 = vmatpush2.msra.mxu0 0.0
    %551 = vmatprep.subr.mxu0 0.0
    %552 = vmatpush2.msra.mxu0 0.0
    %553 = vmatprep.subr.mxu0 0.0
    %554 = vmatpush2.msra.mxu0 0.0
    %555 = vmatprep.subr.mxu0 0.0
    %556 = vmatpush2.msra.mxu0 0.0
    %557 = vmatprep.subr.mxu0 0.0
    %558 = vmatpush2.msra.mxu0 0.0
    %559 = vmatprep.subr.mxu0 0.0
    %560 = vmatpush2.msra.mxu0 0.0
    %561 = vmatprep.subr.mxu0 0.0
    %562 = vmatpush2.msra.mxu0 0.0
    %563 = vmatprep.subr.mxu0 0.0
    %564 = vmatpush2.msra.mxu0 0.0
    %565 = vmatprep.subr.mxu0 0.0
    %566 = vmatpush2.msra.mxu0 0.0
    %567 = vmatprep.subr.mxu0 0.0
    %568 = vmatpush2.msra.mxu0 0.0
    %569 = vmatprep.subr.mxu0 0.0
    %570 = vmatpush2.msra.mxu0 0.0
    %571 = vmatprep.subr.mxu0 0.0
    %572 = vmatpush2.msra.mxu0 0.0
    %573 = vmatprep.subr.mxu0 0.0
    %574 = vmatpush2.msra.mxu0 %v505
    %575 = vmatprep.subr.mxu0 0.0
    %576 = vmatpush2.msra.mxu0 %v504
    %577 = vmatprep.subr.mxu0 0.0
    %578 = vmatpush2.msra.mxu0 %v503
    %579 = vmatprep.subr.mxu0 0.0
    %580 = vmatpush2.msra.mxu0 %v502
    %581 = vmatprep.mubr.f32.mxu0 %v515
    %582 = vmatmul.mubr.f32.gmra.mxu0 %v484
    %v583 = vpop.f32.mrf.mxu0
    %v584 = vadd.f32 %v511, %v583
    %v585 = vpop.f32.mrf.mxu0
    %586 = vdwg.mxu0
    %v587 = vmax.f32 %v584, 0.0
    %588 = vst [vmem:[#allocation5] sm:$0xff] %v587
    // Predicated region
    $region38: #{tpu_custom_call.1} parent=1 // pred_check
      _
    $region39: #{tpu_custom_call.1} parent=1 // pred_check_branch
      %590 = sbr.rel (0) target = $region41
    $region40: #{tpu_custom_call.1} parent=1 // pred_region
      %s592 = ssub.s32 128, 128
      %593 = vsyncadd [#allocation4], %s592
      %s595 = sshll.u32 [#allocation5], 4
      %s596 = int_to_ptr.vmem [resolvable:$true] %s595
      %598 = dma.vmem_to_hbm [thread:$0]  %s596, 128, %s8, [#allocation4]
    $region41: #{tpu_custom_call.1} parent=1 // pred_fallthru
      _
    // Predicated region
    $region42: #{tpu_custom_call.1} parent=1 // pred_check
      _
    $region43: #{tpu_custom_call.1} parent=1 // pred_check_branch
      %600 = sbr.rel (0) target = $region45
    $region44: #{tpu_custom_call.1} parent=1 // pred_region
      %601 = dma.done [#allocation4], 128
    $region45: #{tpu_custom_call.1} parent=1 // pred_fallthru
      _
    %602 = vsyncpa [#allocation3], 1
    %603 = vsyncpa [#allocation4], 1

// kernel: tpu_custom_call.1
$region0: #{tpu_custom_call.1}
  #allocation0 [shape = 'u32[]', space=smem, size = 0x4, offset = 0x4, fixed_abs, tag = 'smem constant byte address 0x4 - core index']
  #allocation1 [shape = 'u32[144,128]{1,0:T(1,128)}', space=vmem, size = 0x12000, scoped, tag = 'internal scratch']
  %s0 = inlined_call_operand.vmem [shape: f32[8,256], index: 0, kind: input, shape index: {}]
  %s1 = inlined_call_operand.hbm [shape: f32[256,256], index: 1, kind: input, shape index: {}]
  %s2 = inlined_call_operand.vmem [shape: f32[256,8], index: 2, kind: input, shape index: {}]
  %s3 = inlined_call_operand.vmem [shape: f32[8,128], index: 3, kind: input, shape index: {}]
  %s4 = inlined_call_operand.vmem [shape: f32[20,160], index: 4, kind: input, shape index: {}]
  %s5 = inlined_call_operand.vmem [shape: f32[1,160], index: 5, kind: input, shape index: {}]
  %s6 = inlined_call_operand.vmem [shape: f32[160,128], index: 6, kind: input, shape index: {}]
  %s7 = inlined_call_operand.vmem [shape: f32[1,128], index: 7, kind: input, shape index: {}]
  %s8 = inlined_call_operand.hbm [shape: f32[8,128], index: 8, kind: output, shape index: {}]
  %s9 = sld [smem:[#allocation0]]
  $region46: #{tpu_custom_call.1} parent=0
    _
  %s11 = ssub.s32 1, %s9
  %s12 = scalar_select 0, %s11, %s9
  $region1: #{tpu_custom_call.1} parent=0
    #allocation2 [shape = 'u8[262144]{0}', space=vmem, size = 0x40000, scoped, tag = 'input window, operand 1, single buffered']
    #allocation3 [shape = 's32[1]{0}', space=sflag, size = 0x4, scoped, tag = 'scoped memory for tpu_custom_call.1']
    #allocation4 [shape = 's32[1]{0}', space=sflag, size = 0x4, scoped, tag = 'scoped memory for tpu_custom_call.1']
    #allocation5 [shape = 'u8[4096]{0}', space=vmem, size = 0x1000, scoped, tag = 'output window, operand 0, single buffered']
    %13 = vsyncpa [#allocation3], 0
    %14 = vsyncpa [#allocation4], 0
    // Predicated region
    $region2: #{tpu_custom_call.1} parent=1 // pred_check
      _
    $region3: #{tpu_custom_call.1} parent=1 // pred_check_branch
      %16 = sbr.rel (0) target = $region5
    $region4: #{tpu_custom_call.1} parent=1 // pred_region
      _
    $region5: #{tpu_custom_call.1} parent=1 // pred_fallthru
      _
    // Predicated region
    $region6: #{tpu_custom_call.1} parent=1 // pred_check
      _
    $region7: #{tpu_custom_call.1} parent=1 // pred_check_branch
      %18 = sbr.rel (0) target = $region9
    $region8: #{tpu_custom_call.1} parent=1 // pred_region
      %s20 = ssub.s32 8192, 8192
      %21 = vsyncadd [#allocation3], %s20
      %s22 = sshll.u32 [#allocation2], 4
      %s23 = int_to_ptr.vmem [resolvable:$true] %s22
      %28 = dma.hbm_to_vmem [thread:$0]  %s1, 8192, %s23, [#allocation3], 256, 256, 16
    $region9: #{tpu_custom_call.1} parent=1 // pred_fallthru
      _
    // Predicated region
    $region10: #{tpu_custom_call.1} parent=1 // pred_check
      _
    $region11: #{tpu_custom_call.1} parent=1 // pred_check_branch
      %30 = sbr.rel (0) target = $region13
    $region12: #{tpu_custom_call.1} parent=1 // pred_region
      _
    $region13: #{tpu_custom_call.1} parent=1 // pred_fallthru
      _
    // Predicated region
    $region14: #{tpu_custom_call.1} parent=1 // pred_check
      _
    $region15: #{tpu_custom_call.1} parent=1 // pred_check_branch
      %32 = sbr.rel (0) target = $region17
    $region16: #{tpu_custom_call.1} parent=1 // pred_region
      _
    $region17: #{tpu_custom_call.1} parent=1 // pred_fallthru
      _
    // Predicated region
    $region18: #{tpu_custom_call.1} parent=1 // pred_check
      _
    $region19: #{tpu_custom_call.1} parent=1 // pred_check_branch
      %34 = sbr.rel (0) target = $region21
    $region20: #{tpu_custom_call.1} parent=1 // pred_region
      _
    $region21: #{tpu_custom_call.1} parent=1 // pred_fallthru
      _
    // Predicated region
    $region22: #{tpu_custom_call.1} parent=1 // pred_check
      _
    $region23: #{tpu_custom_call.1} parent=1 // pred_check_branch
      %36 = sbr.rel (0) target = $region25
    $region24: #{tpu_custom_call.1} parent=1 // pred_region
      _
    $region25: #{tpu_custom_call.1} parent=1 // pred_fallthru
      _
    // Predicated region
    $region26: #{tpu_custom_call.1} parent=1 // pred_check
      _
    $region27: #{tpu_custom_call.1} parent=1 // pred_check_branch
      %38 = sbr.rel (0) target = $region29
    $region28: #{tpu_custom_call.1} parent=1 // pred_region
      _
    $region29: #{tpu_custom_call.1} parent=1 // pred_fallthru
      _
    // Predicated region
    $region30: #{tpu_custom_call.1} parent=1 // pred_check
      _
    $region31: #{tpu_custom_call.1} parent=1 // pred_check_branch
      %40 = sbr.rel (0) target = $region33
    $region32: #{tpu_custom_call.1} parent=1 // pred_region
      _
    $region33: #{tpu_custom_call.1} parent=1 // pred_fallthru
      _
    // Predicated region
    $region34: #{tpu_custom_call.1} parent=1 // pred_check
      _
    $region35: #{tpu_custom_call.1} parent=1 // pred_check_branch
      %42 = sbr.rel (0) target = $region37
    $region36: #{tpu_custom_call.1} parent=1 // pred_region
      %43 = dma.done [#allocation3], 8192
    $region37: #{tpu_custom_call.1} parent=1 // pred_fallthru
      _
    %v44 = vld [vmem:[%s0] sm:$0xff]
    %v45 = vld [vmem:[%s0 + $0x8] sm:$0xff]
    %v46 = vld [vmem:[#allocation2] sm:$0xff]
    %v47 = vld [vmem:[#allocation2 + $0x8] sm:$0xff]
    %v48 = vld [vmem:[#allocation2 + $0x10] sm:$0xff]
    %v49 = vld [vmem:[#allocation2 + $0x18] sm:$0xff]
    %v50 = vld [vmem:[#allocation2 + $0x20] sm:$0xff]
    %v51 = vld [vmem:[#allocation2 + $0x28] sm:$0xff]
    %v52 = vld [vmem:[#allocation2 + $0x30] sm:$0xff]
    %v53 = vld [vmem:[#allocation2 + $0x38] sm:$0xff]
    %v54 = vld [vmem:[#allocation2 + $0x40] sm:$0xff]
    %v55 = vld [vmem:[#allocation2 + $0x48] sm:$0xff]
    %v56 = vld [vmem:[#allocation2 + $0x50] sm:$0xff]
    %v57 = vld [vmem:[#allocation2 + $0x58] sm:$0xff]
    %v58 = vld [vmem:[#allocation2 + $0x60] sm:$0xff]
    %v59 = vld [vmem:[#allocation2 + $0x68] sm:$0xff]
    %v60 = vld [vmem:[#allocation2 + $0x70] sm:$0xff]
    %v61 = vld [vmem:[#allocation2 + $0x78] sm:$0xff]
    %v62 = vld [vmem:[#allocation2 + $0x80] sm:$0xff]
    %v63 = vld [vmem:[#allocation2 + $0x88] sm:$0xff]
    %v64 = vld [vmem:[#allocation2 + $0x90] sm:$0xff]
    %v65 = vld [vmem:[#allocation2 + $0x98] sm:$0xff]
    %v66 = vld [vmem:[#allocation2 + $0xa0] sm:$0xff]
    %v67 = vld [vmem:[#allocation2 + $0xa8] sm:$0xff]
    %v68 = vld [vmem:[#allocation2 + $0xb0] sm:$0xff]
    %v69 = vld [vmem:[#allocation2 + $0xb8] sm:$0xff]
    %v70 = vld [vmem:[#allocation2 + $0xc0] sm:$0xff]
    %v71 = vld [vmem:[#allocation2 + $0xc8] sm:$0xff]
    %v72 = vld [vmem:[#allocation2 + $0xd0] sm:$0xff]
    %v73 = vld [vmem:[#allocation2 + $0xd8] sm:$0xff]
    %v74 = vld [vmem:[#allocation2 + $0xe0] sm:$0xff]
    %v75 = vld [vmem:[#allocation2 + $0xe8] sm:$0xff]
    %v76 = vld [vmem:[#allocation2 + $0xf0] sm:$0xff]
    %v77 = vld [vmem:[#allocation2 + $0xf8] sm:$0xff]
    %v78 = vld [vmem:[#allocation2 + $0x100] sm:$0xff]
    %v79 = vld [vmem:[#allocation2 + $0x108] sm:$0xff]
    %v80 = vld [vmem:[#allocation2 + $0x110] sm:$0xff]
    %v81 = vld [vmem:[#allocation2 + $0x118] sm:$0xff]
    %v82 = vld [vmem:[#allocation2 + $0x120] sm:$0xff]
    %v83 = vld [vmem:[#allocation2 + $0x128] sm:$0xff]
    %v84 = vld [vmem:[#allocation2 + $0x130] sm:$0xff]
    %v85 = vld [vmem:[#allocation2 + $0x138] sm:$0xff]
    %v86 = vld [vmem:[#allocation2 + $0x140] sm:$0xff]
    %v87 = vld [vmem:[#allocation2 + $0x148] sm:$0xff]
    %v88 = vld [vmem:[#allocation2 + $0x150] sm:$0xff]
    %v89 = vld [vmem:[#allocation2 + $0x158] sm:$0xff]
    %v90 = vld [vmem:[#allocation2 + $0x160] sm:$0xff]
    %v91 = vld [vmem:[#allocation2 + $0x168] sm:$0xff]
    %v92 = vld [vmem:[#allocation2 + $0x170] sm:$0xff]
    %v93 = vld [vmem:[#allocation2 + $0x178] sm:$0xff]
    %v94 = vld [vmem:[#allocation2 + $0x180] sm:$0xff]
    %v95 = vld [vmem:[#allocation2 + $0x188] sm:$0xff]
    %v96 = vld [vmem:[#allocation2 + $0x190] sm:$0xff]
    %v97 = vld [vmem:[#allocation2 + $0x198] sm:$0xff]
    %v98 = vld [vmem:[#allocation2 + $0x1a0] sm:$0xff]
    %v99 = vld [vmem:[#allocation2 + $0x1a8] sm:$0xff]
    %v100 = vld [vmem:[#allocation2 + $0x1b0] sm:$0xff]
    %v101 = vld [vmem:[#allocation2 + $0x1b8] sm:$0xff]
    %v102 = vld [vmem:[#allocation2 + $0x1c0] sm:$0xff]
    %v103 = vld [vmem:[#allocation2 + $0x1c8] sm:$0xff]
    %v104 = vld [vmem:[#allocation2 + $0x1d0] sm:$0xff]
    %v105 = vld [vmem:[#allocation2 + $0x1d8] sm:$0xff]
    %v106 = vld [vmem:[#allocation2 + $0x1e0] sm:$0xff]
    %v107 = vld [vmem:[#allocation2 + $0x1e8] sm:$0xff]
    %v108 = vld [vmem:[#allocation2 + $0x1f0] sm:$0xff]
    %v109 = vld [vmem:[#allocation2 + $0x1f8] sm:$0xff]
    %110 = vmatprep.subr.mxu0 %v77
    %111 = vmatpush1.msra.mxu0 %v76
    %112 = vmatprep.subr.mxu0 %v75
    %113 = vmatpush1.msra.mxu0 %v74
    %114 = vmatprep.subr.mxu0 %v73
    %115 = vmatpush1.msra.mxu0 %v72
    %116 = vmatprep.subr.mxu0 %v71
    %117 = vmatpush1.msra.mxu0 %v70
    %118 = vmatprep.subr.mxu0 %v69
    %119 = vmatpush1.msra.mxu0 %v68
    %120 = vmatprep.subr.mxu0 %v67
    %121 = vmatpush1.msra.mxu0 %v66
    %122 = vmatprep.subr.mxu0 %v65
    %123 = vmatpush1.msra.mxu0 %v64
    %124 = vmatprep.subr.mxu0 %v63
    %125 = vmatpush1.msra.mxu0 %v62
    %126 = vmatprep.subr.mxu0 %v61
    %127 = vmatpush1.msra.mxu0 %v60
    %128 = vmatprep.subr.mxu0 %v59
    %129 = vmatpush1.msra.mxu0 %v58
    %130 = vmatprep.subr.mxu0 %v57
    %131 = vmatpush1.msra.mxu0 %v56
    %132 = vmatprep.subr.mxu0 %v55
    %133 = vmatpush1.msra.mxu0 %v54
    %134 = vmatprep.subr.mxu0 %v53
    %135 = vmatpush1.msra.mxu0 %v52
    %136 = vmatprep.subr.mxu0 %v51
    %137 = vmatpush1.msra.mxu0 %v50
    %138 = vmatprep.subr.mxu0 %v49
    %139 = vmatpush1.msra.mxu0 %v48
    %140 = vmatprep.subr.mxu0 %v47
    %141 = vmatpush1.msra.mxu0 %v46
    %142 = vmatprep.subr.mxu0 %v109
    %143 = vmatpush2.msra.mxu0 %v108
    %144 = vmatprep.subr.mxu0 %v107
    %145 = vmatpush2.msra.mxu0 %v106
    %146 = vmatprep.subr.mxu0 %v105
    %147 = vmatpush2.msra.mxu0 %v104
    %148 = vmatprep.subr.mxu0 %v103
    %149 = vmatpush2.msra.mxu0 %v102
    %150 = vmatprep.subr.mxu0 %v101
    %151 = vmatpush2.msra.mxu0 %v100
    %152 = vmatprep.subr.mxu0 %v99
    %153 = vmatpush2.msra.mxu0 %v98
    %154 = vmatprep.subr.mxu0 %v97
    %155 = vmatpush2.msra.mxu0 %v96
    %156 = vmatprep.subr.mxu0 %v95
    %157 = vmatpush2.msra.mxu0 %v94
    %158 = vmatprep.subr.mxu0 %v93
    %159 = vmatpush2.msra.mxu0 %v92
    %160 = vmatprep.subr.mxu0 %v91
    %161 = vmatpush2.msra.mxu0 %v90
    %162 = vmatprep.subr.mxu0 %v89
    %163 = vmatpush2.msra.mxu0 %v88
    %164 = vmatprep.subr.mxu0 %v87
    %165 = vmatpush2.msra.mxu0 %v86
    %166 = vmatprep.subr.mxu0 %v85
    %167 = vmatpush2.msra.mxu0 %v84
    %168 = vmatprep.subr.mxu0 %v83
    %169 = vmatpush2.msra.mxu0 %v82
    %170 = vmatprep.subr.mxu0 %v81
    %171 = vmatpush2.msra.mxu0 %v80
    %172 = vmatprep.subr.mxu0 %v79
    %173 = vmatpush2.msra.mxu0 %v78
    %174 = vmatprep.mubr.f32.mxu0 %v45
    %175 = vmatmul.mubr.f32.gmra.mxu0 %v44
    %v176 = vpop.f32.mrf.mxu0
    %v177 = vadd.f32 0.0, %v176
    %v178 = vpop.f32.mrf.mxu0
    %v179 = vadd.f32 0.0, %v178
    %180 = vdwg.mxu0
    %v181 = vmul.f32 %v177, %v177
    %v182 = vmul.f32 %v179, %v179
    %v183 = vld [vmem:[%s2] sm:$0xff]
    %v184 = vld [vmem:[%s2 + $0x8] sm:$0xff]
    %v185 = vld [vmem:[%s2 + $0x10] sm:$0xff]
    %v186 = vld [vmem:[%s2 + $0x18] sm:$0xff]
    %v187 = vld [vmem:[%s2 + $0x20] sm:$0xff]
    %v188 = vld [vmem:[%s2 + $0x28] sm:$0xff]
    %v189 = vld [vmem:[%s2 + $0x30] sm:$0xff]
    %v190 = vld [vmem:[%s2 + $0x38] sm:$0xff]
    %v191 = vld [vmem:[%s2 + $0x40] sm:$0xff]
    %v192 = vld [vmem:[%s2 + $0x48] sm:$0xff]
    %v193 = vld [vmem:[%s2 + $0x50] sm:$0xff]
    %v194 = vld [vmem:[%s2 + $0x58] sm:$0xff]
    %v195 = vld [vmem:[%s2 + $0x60] sm:$0xff]
    %v196 = vld [vmem:[%s2 + $0x68] sm:$0xff]
    %v197 = vld [vmem:[%s2 + $0x70] sm:$0xff]
    %v198 = vld [vmem:[%s2 + $0x78] sm:$0xff]
    %v199 = vld [vmem:[%s2 + $0x80] sm:$0xff]
    %v200 = vld [vmem:[%s2 + $0x88] sm:$0xff]
    %v201 = vld [vmem:[%s2 + $0x90] sm:$0xff]
    %v202 = vld [vmem:[%s2 + $0x98] sm:$0xff]
    %v203 = vld [vmem:[%s2 + $0xa0] sm:$0xff]
    %v204 = vld [vmem:[%s2 + $0xa8] sm:$0xff]
    %v205 = vld [vmem:[%s2 + $0xb0] sm:$0xff]
    %v206 = vld [vmem:[%s2 + $0xb8] sm:$0xff]
    %v207 = vld [vmem:[%s2 + $0xc0] sm:$0xff]
    %v208 = vld [vmem:[%s2 + $0xc8] sm:$0xff]
    %v209 = vld [vmem:[%s2 + $0xd0] sm:$0xff]
    %v210 = vld [vmem:[%s2 + $0xd8] sm:$0xff]
    %v211 = vld [vmem:[%s2 + $0xe0] sm:$0xff]
    %v212 = vld [vmem:[%s2 + $0xe8] sm:$0xff]
    %v213 = vld [vmem:[%s2 + $0xf0] sm:$0xff]
    %v214 = vld [vmem:[%s2 + $0xf8] sm:$0xff]
    %215 = vmatprep.subr.mxu0 0.0
    %216 = vmatpush1.msra.mxu0 %v198
    %217 = vmatprep.subr.mxu0 0.0
    %218 = vmatpush1.msra.mxu0 %v197
    %219 = vmatprep.subr.mxu0 0.0
    %220 = vmatpush1.msra.mxu0 %v196
    %221 = vmatprep.subr.mxu0 0.0
    %222 = vmatpush1.msra.mxu0 %v195
    %223 = vmatprep.subr.mxu0 0.0
    %224 = vmatpush1.msra.mxu0 %v194
    %225 = vmatprep.subr.mxu0 0.0
    %226 = vmatpush1.msra.mxu0 %v193
    %227 = vmatprep.subr.mxu0 0.0
    %228 = vmatpush1.msra.mxu0 %v192
    %229 = vmatprep.subr.mxu0 0.0
    %230 = vmatpush1.msra.mxu0 %v191
    %231 = vmatprep.subr.mxu0 0.0
    %232 = vmatpush1.msra.mxu0 %v190
    %233 = vmatprep.subr.mxu0 0.0
    %234 = vmatpush1.msra.mxu0 %v189
    %235 = vmatprep.subr.mxu0 0.0
    %236 = vmatpush1.msra.mxu0 %v188
    %237 = vmatprep.subr.mxu0 0.0
    %238 = vmatpush1.msra.mxu0 %v187
    %239 = vmatprep.subr.mxu0 0.0
    %240 = vmatpush1.msra.mxu0 %v186
    %241 = vmatprep.subr.mxu0 0.0
    %242 = vmatpush1.msra.mxu0 %v185
    %243 = vmatprep.subr.mxu0 0.0
    %244 = vmatpush1.msra.mxu0 %v184
    %245 = vmatprep.subr.mxu0 0.0
    %246 = vmatpush1.msra.mxu0 %v183
    %247 = vmatprep.subr.mxu0 0.0
    %248 = vmatpush2.msra.mxu0 %v214
    %249 = vmatprep.subr.mxu0 0.0
    %250 = vmatpush2.msra.mxu0 %v213
    %251 = vmatprep.subr.mxu0 0.0
    %252 = vmatpush2.msra.mxu0 %v212
    %253 = vmatprep.subr.mxu0 0.0
    %254 = vmatpush2.msra.mxu0 %v211
    %255 = vmatprep.subr.mxu0 0.0
    %256 = vmatpush2.msra.mxu0 %v210
    %257 = vmatprep.subr.mxu0 0.0
    %258 = vmatpush2.msra.mxu0 %v209
    %259 = vmatprep.subr.mxu0 0.0
    %260 = vmatpush2.msra.mxu0 %v208
    %261 = vmatprep.subr.mxu0 0.0
    %262 = vmatpush2.msra.mxu0 %v207
    %263 = vmatprep.subr.mxu0 0.0
    %264 = vmatpush2.msra.mxu0 %v206
    %265 = vmatprep.subr.mxu0 0.0
    %266 = vmatpush2.msra.mxu0 %v205
    %267 = vmatprep.subr.mxu0 0.0
    %268 = vmatpush2.msra.mxu0 %v204
    %269 = vmatprep.subr.mxu0 0.0
    %270 = vmatpush2.msra.mxu0 %v203
    %271 = vmatprep.subr.mxu0 0.0
    %272 = vmatpush2.msra.mxu0 %v202
    %273 = vmatprep.subr.mxu0 0.0
    %274 = vmatpush2.msra.mxu0 %v201
    %275 = vmatprep.subr.mxu0 0.0
    %276 = vmatpush2.msra.mxu0 %v200
    %277 = vmatprep.subr.mxu0 0.0
    %278 = vmatpush2.msra.mxu0 %v199
    %279 = vmatprep.mubr.f32.mxu0 %v182
    %280 = vmatmul.mubr.f32.gmra.mxu0 %v181
    %v281 = vpop.f32.mrf.mxu0
    %v282 = vadd.f32 0.0, %v281
    %v283 = vpop.f32.mrf.mxu0
    %284 = vdwg.mxu0
    %v285 = vmax.f32 %v282, 0.0
    %v286 = vrsqrt.pop %v285
    %v287 = vmul.f32 %v285, %v286
    %vm288 = vcmp.eq.f32.partialorder %v285, inf
    %v289 = vsel %vm288, %v285, %v287
    %vm290 = vcmp.eq.f32.partialorder %v285, 0.0
    %v291 = vand.u32 %v285, 2147483648
    %v292 = vsel %vm290, %v291, %v289
    %v293 = vld [vmem:[%s3] sm:$0x1]
    %v294 = vlaneseq
    %v295 = vshrl.u32 %v294, 7
    %v296 = vsub.s32 0, %v295
    %v297 = vrot.slane %v293, %v296
    %v298 = vadd.f32 %v177, %v297
    %299 = vmax.xlane.f32.xlu0 %v298
    %v300 = vpop.xlane.xlu0 %299
    %v301 = vsub.f32 %v177, %v297
    %302 = vmin.xlane.f32.xlu0 %v301
    %v303 = vpop.xlane.xlu0 %302
    %v304 = vld [vmem:[%s3 + $0x1] sm:$0x1]
    %v305 = vlaneseq
    %v306 = vshrl.u32 %v305, 7
    %v307 = vsub.s32 0, %v306
    %v308 = vrot.slane %v304, %v307
    %v309 = vadd.f32 %v177, %v308
    %310 = vmax.xlane.f32.xlu0 %v309
    %v311 = vpop.xlane.xlu0 %310
    %v312 = vsub.f32 %v177, %v308
    %313 = vmin.xlane.f32.xlu0 %v312
    %v314 = vpop.xlane.xlu0 %313
    %v315 = vld [vmem:[%s3 + $0x2] sm:$0x1]
    %v316 = vlaneseq
    %v317 = vshrl.u32 %v316, 7
    %v318 = vsub.s32 0, %v317
    %v319 = vrot.slane %v315, %v318
    %v320 = vadd.f32 %v177, %v319
    %321 = vmax.xlane.f32.xlu0 %v320
    %v322 = vpop.xlane.xlu0 %321
    %v323 = vsub.f32 %v177, %v319
    %324 = vmin.xlane.f32.xlu0 %v323
    %v325 = vpop.xlane.xlu0 %324
    %v326 = vld [vmem:[%s3 + $0x3] sm:$0x1]
    %v327 = vlaneseq
    %v328 = vshrl.u32 %v327, 7
    %v329 = vsub.s32 0, %v328
    %v330 = vrot.slane %v326, %v329
    %v331 = vadd.f32 %v177, %v330
    %332 = vmax.xlane.f32.xlu0 %v331
    %v333 = vpop.xlane.xlu0 %332
    %v334 = vsub.f32 %v177, %v330
    %335 = vmin.xlane.f32.xlu0 %v334
    %v336 = vpop.xlane.xlu0 %335
    %v337 = vld [vmem:[%s3 + $0x4] sm:$0x1]
    %v338 = vlaneseq
    %v339 = vshrl.u32 %v338, 7
    %v340 = vsub.s32 0, %v339
    %v341 = vrot.slane %v337, %v340
    %v342 = vadd.f32 %v179, %v341
    %343 = vmax.xlane.f32.xlu0 %v342
    %v344 = vpop.xlane.xlu0 %343
    %v345 = vsub.f32 %v179, %v341
    %346 = vmin.xlane.f32.xlu0 %v345
    %v347 = vpop.xlane.xlu0 %346
    %vm348 = vcmask 7168
    %v349 = vsel %vm348, %v300, %v311
    %vm350 = vcmask 15360
    %v351 = vsel %vm350, %v349, %v322
    %vm352 = vcmask 23552
    %v353 = vsel %vm352, %v351, %v333
    %vm354 = vcmask 31744
    %v355 = vsel %vm354, %v353, %v344
    %357 = vrot.lane.b32.xlu0 %v179, 59
    %v358 = vpop.permute.xlu0 %357
    %v360 = vadd.f32 %v355, %v358
    %v361 = vsel %vm348, %v303, %v314
    %v362 = vsel %vm350, %v361, %v325
    %v363 = vsel %vm352, %v362, %v336
    %v364 = vsel %vm354, %v363, %v347
    %v365 = vadd.f32 %v364, %v358
    %367 = vrot.lane.b32.xlu0 %v292, 5
    %v368 = vpop.permute.xlu0 %367
    %371 = vrot.lane.b32.xlu0 %v360, 10
    %v372 = vpop.permute.xlu0 %371
    %375 = vrot.lane.b32.xlu0 %v365, 15
    %v376 = vpop.permute.xlu0 %375
    %vm378 = vcmask 39936
    %v379 = vsel %vm378, %v358, %v368
    %vm380 = vcmask 80896
    %v381 = vsel %vm380, %v379, %v372
    %vm382 = vcmask 121856
    %v383 = vsel %vm382, %v381, %v376
    %v384 = vld [vmem:[%s4] sm:$0xff]
    %v385 = vld [vmem:[%s4 + $0x8] sm:$0xff]
    %v386 = vld [vmem:[%s4 + $0x10] sm:$0xff]
    %v387 = vld [vmem:[%s4 + $0x18] sm:$0xff]
    %v388 = vld [vmem:[%s4 + $0x20] sm:$0xf]
    %v389 = vld [vmem:[%s4 + $0x28] sm:$0xf]
    %v390 = vld [vmem:[%s5] sm:$0x3]
    %v392 = vlaneseq
    %v393 = vshrl.u32 %v392, 7
    %v394 = vsub.s32 0, %v393
    %v395 = vrot.slane %v390, %v394
    %v396 = vlaneseq
    %v397 = vshrl.u32 %v396, 7
    %v398 = vsub.s32 1, %v397
    %v399 = vrot.slane %v390, %v398
    %vm402 = vcmask 162816
    %v404 = vsel %vm402, %v383, 0
    %vm406 = vcmask 1043456
    %v408 = vsel %vm406, %v388, 0
    %v411 = vsel %vm406, %v389, 0
    %413 = vmatprep.subr.mxu0 0.0
    %414 = vmatpush1.msra.mxu0 0.0
    %415 = vmatprep.subr.mxu0 0.0
    %416 = vmatpush1.msra.mxu0 0.0
    %417 = vmatprep.subr.mxu0 0.0
    %418 = vmatpush1.msra.mxu0 0.0
    %419 = vmatprep.subr.mxu0 0.0
    %420 = vmatpush1.msra.mxu0 0.0
    %421 = vmatprep.subr.mxu0 0.0
    %422 = vmatpush1.msra.mxu0 0.0
    %423 = vmatprep.subr.mxu0 0.0
    %424 = vmatpush1.msra.mxu0 0.0
    %425 = vmatprep.subr.mxu0 0.0
    %426 = vmatpush1.msra.mxu0 0.0
    %427 = vmatprep.subr.mxu0 0.0
    %428 = vmatpush1.msra.mxu0 0.0
    %429 = vmatprep.subr.mxu0 0.0
    %430 = vmatpush1.msra.mxu0 0.0
    %431 = vmatprep.subr.mxu0 0.0
    %432 = vmatpush1.msra.mxu0 0.0
    %433 = vmatprep.subr.mxu0 0.0
    %434 = vmatpush1.msra.mxu0 0.0
    %435 = vmatprep.subr.mxu0 0.0
    %436 = vmatpush1.msra.mxu0 0.0
    %437 = vmatprep.subr.mxu0 0.0
    %438 = vmatpush1.msra.mxu0 0.0
    %439 = vmatprep.subr.mxu0 %v411
    %440 = vmatpush1.msra.mxu0 %v408
    %441 = vmatprep.subr.mxu0 %v387
    %442 = vmatpush1.msra.mxu0 %v386
    %443 = vmatprep.subr.mxu0 %v385
    %444 = vmatpush1.msra.mxu0 %v384
    %445 = vmatprep.subr.mxu0 0.0
    %446 = vmatpush2.msra.mxu0 0.0
    %447 = vmatprep.subr.mxu0 0.0
    %448 = vmatpush2.msra.mxu0 0.0
    %449 = vmatprep.subr.mxu0 0.0
    %450 = vmatpush2.msra.mxu0 0.0
    %451 = vmatprep.subr.mxu0 0.0
    %452 = vmatpush2.msra.mxu0 0.0
    %453 = vmatprep.subr.mxu0 0.0
    %454 = vmatpush2.msra.mxu0 0.0
    %455 = vmatprep.subr.mxu0 0.0
    %456 = vmatpush2.msra.mxu0 0.0
    %457 = vmatprep.subr.mxu0 0.0
    %458 = vmatpush2.msra.mxu0 0.0
    %459 = vmatprep.subr.mxu0 0.0
    %460 = vmatpush2.msra.mxu0 0.0
    %461 = vmatprep.subr.mxu0 0.0
    %462 = vmatpush2.msra.mxu0 0.0
    %463 = vmatprep.subr.mxu0 0.0
    %464 = vmatpush2.msra.mxu0 0.0
    %465 = vmatprep.subr.mxu0 0.0
    %466 = vmatpush2.msra.mxu0 0.0
    %467 = vmatprep.subr.mxu0 0.0
    %468 = vmatpush2.msra.mxu0 0.0
    %469 = vmatprep.subr.mxu0 0.0
    %470 = vmatpush2.msra.mxu0 0.0
    %471 = vmatprep.subr.mxu0 0.0
    %472 = vmatpush2.msra.mxu0 0.0
    %473 = vmatprep.subr.mxu0 0.0
    %474 = vmatpush2.msra.mxu0 0.0
    %475 = vmatprep.subr.mxu0 0.0
    %476 = vmatpush2.msra.mxu0 0.0
    %477 = vmatprep.mubr.f32.mxu0 0.0
    %478 = vmatmul.mubr.f32.gmra.mxu0 %v404
    %v479 = vpop.f32.mrf.mxu0
    %v480 = vadd.f32 %v395, %v479
    %v481 = vpop.f32.mrf.mxu0
    %v482 = vadd.f32 %v399, %v481
    %483 = vdwg.mxu0
    %v484 = vmax.f32 %v480, 0.0
    %v485 = vmax.f32 %v482, 0.0
    %v486 = vld [vmem:[%s6] sm:$0xff]
    %v487 = vld [vmem:[%s6 + $0x8] sm:$0xff]
    %v488 = vld [vmem:[%s6 + $0x10] sm:$0xff]
    %v489 = vld [vmem:[%s6 + $0x18] sm:$0xff]
    %v490 = vld [vmem:[%s6 + $0x20] sm:$0xff]
    %v491 = vld [vmem:[%s6 + $0x28] sm:$0xff]
    %v492 = vld [vmem:[%s6 + $0x30] sm:$0xff]
    %v493 = vld [vmem:[%s6 + $0x38] sm:$0xff]
    %v494 = vld [vmem:[%s6 + $0x40] sm:$0xff]
    %v495 = vld [vmem:[%s6 + $0x48] sm:$0xff]
    %v496 = vld [vmem:[%s6 + $0x50] sm:$0xff]
    %v497 = vld [vmem:[%s6 + $0x58] sm:$0xff]
    %v498 = vld [vmem:[%s6 + $0x60] sm:$0xff]
    %v499 = vld [vmem:[%s6 + $0x68] sm:$0xff]
    %v500 = vld [vmem:[%s6 + $0x70] sm:$0xff]
    %v501 = vld [vmem:[%s6 + $0x78] sm:$0xff]
    %v502 = vld [vmem:[%s6 + $0x80] sm:$0xff]
    %v503 = vld [vmem:[%s6 + $0x88] sm:$0xff]
    %v504 = vld [vmem:[%s6 + $0x90] sm:$0xff]
    %v505 = vld [vmem:[%s6 + $0x98] sm:$0xff]
    %v506 = vld [vmem:[%s7] sm:$0x1]
    %v508 = vlaneseq
    %v509 = vshrl.u32 %v508, 7
    %v510 = vsub.s32 0, %v509
    %v511 = vrot.slane %v506, %v510
    %vm513 = vcmask 261120
    %v515 = vsel %vm513, %v485, 0
    %517 = vmatprep.subr.mxu0 0.0
    %518 = vmatpush1.msra.mxu0 %v501
    %519 = vmatprep.subr.mxu0 0.0
    %520 = vmatpush1.msra.mxu0 %v500
    %521 = vmatprep.subr.mxu0 0.0
    %522 = vmatpush1.msra.mxu0 %v499
    %523 = vmatprep.subr.mxu0 0.0
    %524 = vmatpush1.msra.mxu0 %v498
    %525 = vmatprep.subr.mxu0 0.0
    %526 = vmatpush1.msra.mxu0 %v497
    %527 = vmatprep.subr.mxu0 0.0
    %528 = vmatpush1.msra.mxu0 %v496
    %529 = vmatprep.subr.mxu0 0.0
    %530 = vmatpush1.msra.mxu0 %v495
    %531 = vmatprep.subr.mxu0 0.0
    %532 = vmatpush1.msra.mxu0 %v494
    %533 = vmatprep.subr.mxu0 0.0
    %534 = vmatpush1.msra.mxu0 %v493
    %535 = vmatprep.subr.mxu0 0.0
    %536 = vmatpush1.msra.mxu0 %v492
    %537 = vmatprep.subr.mxu0 0.0
    %538 = vmatpush1.msra.mxu0 %v491
    %539 = vmatprep.subr.mxu0 0.0
    %540 = vmatpush1.msra.mxu0 %v490
    %541 = vmatprep.subr.mxu0 0.0
    %542 = vmatpush1.msra.mxu0 %v489
    %543 = vmatprep.subr.mxu0 0.0
    %544 = vmatpush1.msra.mxu0 %v488
    %545 = vmatprep.subr.mxu0 0.0
    %546 = vmatpush1.msra.mxu0 %v487
    %547 = vmatprep.subr.mxu0 0.0
    %548 = vmatpush1.msra.mxu0 %v486
    %549 = vmatprep.subr.mxu0 0.0
    %550 = vmatpush2.msra.mxu0 0.0
    %551 = vmatprep.subr.mxu0 0.0
    %552 = vmatpush2.msra.mxu0 0.0
    %553 = vmatprep.subr.mxu0 0.0
    %554 = vmatpush2.msra.mxu0 0.0
    %555 = vmatprep.subr.mxu0 0.0
    %556 = vmatpush2.msra.mxu0 0.0
    %557 = vmatprep.subr.mxu0 0.0
    %558 = vmatpush2.msra.mxu0 0.0
    %559 = vmatprep.subr.mxu0 0.0
    %560 = vmatpush2.msra.mxu0 0.0
    %561 = vmatprep.subr.mxu0 0.0
    %562 = vmatpush2.msra.mxu0 0.0
    %563 = vmatprep.subr.mxu0 0.0
    %564 = vmatpush2.msra.mxu0 0.0
    %565 = vmatprep.subr.mxu0 0.0
    %566 = vmatpush2.msra.mxu0 0.0
    %567 = vmatprep.subr.mxu0 0.0
    %568 = vmatpush2.msra.mxu0 0.0
    %569 = vmatprep.subr.mxu0 0.0
    %570 = vmatpush2.msra.mxu0 0.0
    %571 = vmatprep.subr.mxu0 0.0
    %572 = vmatpush2.msra.mxu0 0.0
    %573 = vmatprep.subr.mxu0 0.0
    %574 = vmatpush2.msra.mxu0 %v505
    %575 = vmatprep.subr.mxu0 0.0
    %576 = vmatpush2.msra.mxu0 %v504
    %577 = vmatprep.subr.mxu0 0.0
    %578 = vmatpush2.msra.mxu0 %v503
    %579 = vmatprep.subr.mxu0 0.0
    %580 = vmatpush2.msra.mxu0 %v502
    %581 = vmatprep.mubr.f32.mxu0 %v515
    %582 = vmatmul.mubr.f32.gmra.mxu0 %v484
    %v583 = vpop.f32.mrf.mxu0
    %v584 = vadd.f32 %v511, %v583
    %v585 = vpop.f32.mrf.mxu0
    %586 = vdwg.mxu0
    %v587 = vmax.f32 %v584, 0.0
    %588 = vst [vmem:[#allocation5] sm:$0xff] %v587
    // Predicated region
    $region38: #{tpu_custom_call.1} parent=1 // pred_check
      _
    $region39: #{tpu_custom_call.1} parent=1 // pred_check_branch
      %590 = sbr.rel (0) target = $region41
    $region40: #{tpu_custom_call.1} parent=1 // pred_region
      %s592 = ssub.s32 128, 128
      %593 = vsyncadd [#allocation4], %s592
      %s595 = sshll.u32 [#allocation5], 4
      %s596 = int_to_ptr.vmem [resolvable:$true] %s595
      %598 = dma.vmem_to_hbm [thread:$0]  %s596, 128, %s8, [#allocation4]
    $region41: #{tpu_custom_call.1} parent=1 // pred_fallthru
      _
    // Predicated region
    $region42: #{tpu_custom_call.1} parent=1 // pred_check
      _
    $region43: #{tpu_custom_call.1} parent=1 // pred_check_branch
      %600 = sbr.rel (0) target = $region45
    $region44: #{tpu_custom_call.1} parent=1 // pred_region
      %601 = dma.done [#allocation4], 128
    $region45: #{tpu_custom_call.1} parent=1 // pred_fallthru
      _
    %602 = vsyncpa [#allocation3], 1
    %603 = vsyncpa [#allocation4], 1

</llo_original>
